<compile_context>
chip_gen: v6e
topology: v6e:2x2x1
jax: 0.10.0
libtpu: 0.0.40
codegen_flags: <defaults>
</compile_context>

<pallas_src>
import jax
import jax.numpy as jnp
from jax.experimental import pallas as pl
from jax.experimental.pallas import tpu as pltpu


def _round_up(x, m):
    return (x + m - 1) // m * m


def _erf(x):
    # Abramowitz & Stegun 7.1.26 rational approximation (|err| <= 1.5e-7), built
    # only from guaranteed-lowerable ops (abs / mul / add / div / exp / where).
    a1, a2, a3, a4, a5 = (0.254829592, -0.284496736, 1.421413741,
                          -1.453152027, 1.061405429)
    p = 0.3275911
    ax = jnp.abs(x)
    t = 1.0 / (1.0 + p * ax)
    poly = ((((a5 * t + a4) * t + a3) * t + a2) * t + a1) * t
    y = 1.0 - poly * jnp.exp(-ax * ax)
    return jnp.where(x >= 0.0, y, -y)


def _gelu_exact(x):
    # erf-based ("exact") GELU, matching PyTorch nn.GELU / HF GPT-NeoX default
    # hidden_act="gelu" (NOT the tanh approximation).
    return 0.5 * x * (1.0 + _erf(x * 0.7071067811865476))


def _vmem_limit_bytes():
    # ~100 MiB on v5e/v6e (128 MiB physical), ~51 MiB on v7x (64 MiB physical).
    try:
        cap = pltpu.get_tpu_info().vmem_capacity_bytes
    except Exception:
        cap = 64 * 1024 * 1024
    return min(int(cap * 0.8), 100 * 1024 * 1024)


def _adapter_mlp_kernel(x_ref, w1_ref, b1_ref, w2_ref, b2_ref,
                        wd_ref, bd_ref, wu_ref, bu_ref, o_ref, acc_ref):
    """Fused base MLP (I streamed in chunks) + bottleneck adapter + residual."""
    k = pl.program_id(1)

    @pl.when(k == 0)
    def _():
        acc_ref[...] = jnp.zeros_like(acc_ref)

    # --- frozen base MLP, one chunk of the 4H intermediate dim ---
    h = jnp.dot(x_ref[...], w1_ref[...], preferred_element_type=jnp.float32)
    h = _gelu_exact(h + b1_ref[...].astype(jnp.float32))
    acc_ref[...] += jnp.dot(h.astype(w2_ref.dtype), w2_ref[...],
                            preferred_element_type=jnp.float32)

    # --- adapter + residual, only once the base output is fully accumulated ---
    @pl.when(k == pl.num_programs(1) - 1)
    def _():
        base = acc_ref[...] + b2_ref[...].astype(jnp.float32)
        down = jnp.dot(base.astype(wd_ref.dtype), wd_ref[...],
                       preferred_element_type=jnp.float32)
        down = jnp.maximum(down + bd_ref[...].astype(jnp.float32), 0.0)  # ReLU
        up = jnp.dot(down.astype(wu_ref.dtype), wu_ref[...],
                     preferred_element_type=jnp.float32)
        up = up + bu_ref[...].astype(jnp.float32)
        o_ref[...] = (base + up).astype(o_ref.dtype)   # ln = Identity


def adapter_tuning_forward(hidden_states, params, *, tile_m=None, tile_k=None):
    """hidden_states: (B, S, H) -> (B, S, H)."""
    B, S, H = hidden_states.shape
    M = B * S
    dtype = hidden_states.dtype
    is_bf16 = dtype == jnp.bfloat16

    w1, b1, w2, b2 = params["w1"], params["b1"], params["w2"], params["b2"]
    wd, bd, wu, bu = params["wd"], params["bd"], params["wu"], params["bu"]
    I = w1.shape[1]    # intermediate (4*H)
    Bn = wd.shape[1]   # bottleneck dim

    # --- MXU/layout-friendly padded dims & tiles --------------------------
    sub = 16 if is_bf16 else 8
    if tile_m is None:
        tile_m = min(256 if is_bf16 else 128, _round_up(M, sub))
    M_pad = _round_up(M, tile_m)                 # handles ragged batch*seq
    H_pad = _round_up(H, 128)                    # lane-dense loads/stores
    Bn_pad = _round_up(Bn, 128)                  # unmasked adapter matmuls
    if tile_k is None:
        tile_k = min(512, _round_up(I, 128))     # multiple of 128 (v5e) & 256 (v6e/v7x)
    I_pad = _round_up(I, tile_k)

    grid_m = M_pad // tile_m
    grid_k = I_pad // tile_k

    def pad2(a, r, c):
        return jnp.pad(a, ((0, r - a.shape[0]), (0, c - a.shape[1])))

    x2d = pad2(hidden_states.reshape(M, H), M_pad, H_pad)
    w1p, b1p = pad2(w1, H_pad, I_pad), pad2(b1, 1, I_pad)
    w2p, b2p = pad2(w2, I_pad, H_pad), pad2(b2, 1, H_pad)
    wdp, bdp = pad2(wd, H_pad, Bn_pad), pad2(bd, 1, Bn_pad)
    wup, bup = pad2(wu, Bn_pad, H_pad), pad2(bu, 1, H_pad)

    itemsize = x2d.dtype.itemsize
    weight_bytes = sum(int(a.size) * a.dtype.itemsize
                       for a in (w1p, b1p, w2p, b2p, wdp, bdp, wup, bup))
    cost = pl.CostEstimate(
        flops=2 * M_pad * (2 * H_pad * I_pad + 2 * H_pad * Bn_pad),
        transcendentals=M_pad * I_pad,
        bytes_accessed=2 * M_pad * H_pad * itemsize + weight_bytes,
    )

    def _run(weight_pipeline_mode):
        const = lambda i, k: (0, 0)
        inv = ({} if weight_pipeline_mode is None
               else {"pipeline_mode": weight_pipeline_mode})
        return pl.pallas_call(
            _adapter_mlp_kernel,
            out_shape=jax.ShapeDtypeStruct((M_pad, H_pad), dtype),
            grid_spec=pltpu.PrefetchScalarGridSpec(
                num_scalar_prefetch=0,
                grid=(grid_m, grid_k),
                in_specs=[
                    pl.BlockSpec((tile_m, H_pad), lambda i, k: (i, 0)),   # x row tile
                    pl.BlockSpec((H_pad, tile_k), lambda i, k: (0, k)),   # w1 chunk
                    pl.BlockSpec((1, tile_k), lambda i, k: (0, k)),       # b1 chunk
                    pl.BlockSpec((tile_k, H_pad), lambda i, k: (k, 0)),   # w2 chunk
                    pl.BlockSpec((1, H_pad), const, **inv),               # b2
                    pl.BlockSpec((H_pad, Bn_pad), const, **inv),          # wd
                    pl.BlockSpec((1, Bn_pad), const, **inv),              # bd
                    pl.BlockSpec((Bn_pad, H_pad), const, **inv),          # wu
                    pl.BlockSpec((1, H_pad), const, **inv),               # bu
                ],
                out_specs=pl.BlockSpec((tile_m, H_pad), lambda i, k: (i, 0)),
                scratch_shapes=[pltpu.VMEM((tile_m, H_pad), jnp.float32)],
            ),
            compiler_params=pltpu.CompilerParams(
                dimension_semantics=("parallel", "arbitrary"),
                vmem_limit_bytes=_vmem_limit_bytes(),
            ),
            cost_estimate=cost,
        )(x2d, w1p, b1p, w2p, b2p, wdp, bdp, wup, bup)

    try:
        # Grid-invariant operands (adapter weights/biases, b2) are single-buffered:
        # their index_map is constant, so double-buffering only wastes VMEM.
        out2d = _run(pl.Buffered(buffer_count=1))
    except Exception:
        # TODO(synk): fall back to default double-buffering if this jax build
        # rejects single-buffered pipeline_mode.
        out2d = _run(None)

    return out2d[:M, :H].reshape(B, S, H)


def _reference_forward(hidden_states, params):
    """Pure-JAX (f32) reference mirroring the PyTorch module (exact erf GELU)."""
    f32 = lambda a: a.astype(jnp.float32)
    x = f32(hidden_states)
    h = jax.nn.gelu(x @ f32(params["w1"]) + f32(params["b1"]), approximate=False)
    base = h @ f32(params["w2"]) + f32(params["b2"])
    down = jax.nn.relu(base @ f32(params["wd"]) + f32(params["bd"]))
    up = down @ f32(params["wu"]) + f32(params["bu"])
    return (base + up).astype(hidden_states.dtype)


def _init_params(key, hidden_dim, intermediate_dim, bottleneck_dim, dtype=jnp.float32):
    ks = jax.random.split(key, 8)
    scale = 0.02
    mk = lambda k, shp: (scale * jax.random.normal(k, shp)).astype(dtype)
    return {
        # frozen base GPT-NeoX MLP (stored as (in, out) = W^T of nn.Linear)
        "w1": mk(ks[0], (hidden_dim, intermediate_dim)),
        "b1": mk(ks[1], (1, intermediate_dim)),
        "w2": mk(ks[2], (intermediate_dim, hidden_dim)),
        "b2": mk(ks[3], (1, hidden_dim)),
        # adapter bottleneck
        "wd": mk(ks[4], (hidden_dim, bottleneck_dim)),
        "bd": mk(ks[5], (1, bottleneck_dim)),
        "wu": mk(ks[6], (bottleneck_dim, hidden_dim)),
        "bu": mk(ks[7], (1, hidden_dim)),
    }


if __name__ == "__main__":
    key = jax.random.PRNGKey(0)
    k_x, k_p = jax.random.split(key)

    batch, seq, hidden = 2, 8, 32
    intermediate = 4 * hidden      # GPT-NeoX MLP expansion
    bottleneck = 8                 # adapter bottleneck dim

    # --- f32 check ---------------------------------------------------------
    hs = jax.random.normal(k_x, (batch, seq, hidden), dtype=jnp.float32)
    params = _init_params(k_p, hidden, intermediate, bottleneck, dtype=jnp.float32)

    out = jax.block_until_ready(adapter_tuning_forward(hs, params))
    ref = _reference_forward(hs, params)
    assert out.shape == (batch, seq, hidden)
    assert jnp.allclose(out, ref, atol=1e-4, rtol=1e-4), "f32 mismatch vs JAX reference"

    # --- bf16 check (bf16 MXU operands, f32 accumulation) -------------------
    hs_bf = hs.astype(jnp.bfloat16)
    params_bf = {n: v.astype(jnp.bfloat16) for n, v in params.items()}
    out_bf = jax.block_until_ready(adapter_tuning_forward(hs_bf, params_bf))
    ref_bf = _reference_forward(hs_bf, params_bf).astype(jnp.float32)
    assert out_bf.shape == (batch, seq, hidden)
    assert jnp.allclose(out_bf.astype(jnp.float32), ref_bf, atol=1e-2, rtol=5e-2), \
        "bf16 mismatch vs JAX reference"

    print("KERNEL_OK")
</pallas_src>

<mosaic_0001>
module attributes {stable_mosaic.version = 11 : i64} {
  func.func @_adapter_mlp_kernel(%arg0: i32, %arg1: i32, %arg2: memref<16x128xf32, #tpu.memory_space<vmem>>, %arg3: memref<128x128xf32, #tpu.memory_space<vmem>>, %arg4: memref<1x128xf32, #tpu.memory_space<vmem>>, %arg5: memref<128x128xf32, #tpu.memory_space<vmem>>, %arg6: memref<1x128xf32, #tpu.memory_space<vmem>>, %arg7: memref<128x128xf32, #tpu.memory_space<vmem>>, %arg8: memref<1x128xf32, #tpu.memory_space<vmem>>, %arg9: memref<128x128xf32, #tpu.memory_space<vmem>>, %arg10: memref<1x128xf32, #tpu.memory_space<vmem>>, %arg11: memref<16x128xf32, #tpu.memory_space<vmem>>, %arg12: memref<16x128xf32, #tpu.memory_space<vmem>>) attributes {dimension_semantics = [#tpu.dimension_semantics<parallel>, #tpu.dimension_semantics<arbitrary>], iteration_bounds = array<i64: 1, 1>, scalar_prefetch = 0 : i64, scratch_operands = 1 : i64, tpu.core_type = #tpu.core_type<tc>, window_params = [{transform_indices = @transform_0, window_bounds = array<i64: 16, 128>}, {transform_indices = @transform_1, window_bounds = array<i64: 128, 128>}, {transform_indices = @transform_2, window_bounds = array<i64: 1, 128>}, {transform_indices = @transform_3, window_bounds = array<i64: 128, 128>}, {pipeline_mode = #tpu.pipeline_mode<synchronous>, transform_indices = @transform_4, window_bounds = array<i64: 1, 128>}, {pipeline_mode = #tpu.pipeline_mode<synchronous>, transform_indices = @transform_5, window_bounds = array<i64: 128, 128>}, {pipeline_mode = #tpu.pipeline_mode<synchronous>, transform_indices = @transform_6, window_bounds = array<i64: 1, 128>}, {pipeline_mode = #tpu.pipeline_mode<synchronous>, transform_indices = @transform_7, window_bounds = array<i64: 128, 128>}, {pipeline_mode = #tpu.pipeline_mode<synchronous>, transform_indices = @transform_8, window_bounds = array<i64: 1, 128>}, {transform_indices = @transform_9, window_bounds = array<i64: 16, 128>}]} {
    %c0_i32 = arith.constant 0 : i32
    %0 = arith.cmpi eq, %arg1, %c0_i32 : i32
    %1 = arith.extui %0 : i1 to i32
    %c0_i32_0 = arith.constant 0 : i32
    %2 = arith.cmpi ne, %1, %c0_i32_0 : i32
    scf.if %2 {
      %cst_30 = arith.constant 0.000000e+00 : f32
      %57 = vector.broadcast %cst_30 : f32 to vector<16x128xf32>
      %c0_31 = arith.constant 0 : index
      %c0_32 = arith.constant 0 : index
      %58 = vector.load %arg12[%c0_31, %c0_32] : memref<16x128xf32, #tpu.memory_space<vmem>>, vector<16x128xf32>
      tpu.vector_store %arg12[%c0_31, %c0_32], %57 {strides = array<i32>} : memref<16x128xf32, #tpu.memory_space<vmem>>, vector<16x128xf32>,
    } else {
    }
    %c0 = arith.constant 0 : index
    %c0_1 = arith.constant 0 : index
    %3 = vector.load %arg2[%c0, %c0_1] : memref<16x128xf32, #tpu.memory_space<vmem>>, vector<16x128xf32>
    %c0_2 = arith.constant 0 : index
    %c0_3 = arith.constant 0 : index
    %4 = vector.load %arg3[%c0_2, %c0_3] : memref<128x128xf32, #tpu.memory_space<vmem>>, vector<128x128xf32>
    %cst = arith.constant dense<0.000000e+00> : vector<16x128xf32>
    %5 = tpu.matmul %3, %4, %cst {dimension_numbers = #tpu.dot_dimension_numbers<[1], [0], [0], [1], [0, 0, 1, 1], [], []>} : vector<16x128xf32>, vector<128x128xf32>, vector<16x128xf32> -> vector<16x128xf32>
    %c0_4 = arith.constant 0 : index
    %c0_5 = arith.constant 0 : index
    %6 = vector.load %arg4[%c0_4, %c0_5] : memref<1x128xf32, #tpu.memory_space<vmem>>, vector<1x128xf32>
    %7 = vector.broadcast %6 : vector<1x128xf32> to vector<16x128xf32>
    %8 = arith.addf %5, %7 : vector<16x128xf32>
    %cst_6 = arith.constant 5.000000e-01 : f32
    %9 = vector.broadcast %cst_6 : f32 to vector<16x128xf32>
    %10 = arith.mulf %9, %8 : vector<16x128xf32>
    %cst_7 = arith.constant 0.707106769 : f32
    %11 = vector.broadcast %cst_7 : f32 to vector<16x128xf32>
    %12 = arith.mulf %8, %11 : vector<16x128xf32>
    %13 = math.absf %12 : vector<16x128xf32>
    %cst_8 = arith.constant 0.327591091 : f32
    %14 = vector.broadcast %cst_8 : f32 to vector<16x128xf32>
    %15 = arith.mulf %14, %13 : vector<16x128xf32>
    %cst_9 = arith.constant 1.000000e+00 : f32
    %16 = vector.broadcast %cst_9 : f32 to vector<16x128xf32>
    %17 = arith.addf %16, %15 : vector<16x128xf32>
    %cst_10 = arith.constant 1.000000e+00 : f32
    %18 = vector.broadcast %cst_10 : f32 to vector<16x128xf32>
    %19 = arith.divf %18, %17 : vector<16x128xf32>
    %cst_11 = arith.constant 1.06140542 : f32
    %20 = vector.broadcast %cst_11 : f32 to vector<16x128xf32>
    %21 = arith.mulf %20, %19 : vector<16x128xf32>
    %cst_12 = arith.constant -1.45315206 : f32
    %22 = vector.broadcast %cst_12 : f32 to vector<16x128xf32>
    %23 = arith.addf %21, %22 : vector<16x128xf32>
    %24 = arith.mulf %23, %19 : vector<16x128xf32>
    %cst_13 = arith.constant 1.42141378 : f32
    %25 = vector.broadcast %cst_13 : f32 to vector<16x128xf32>
    %26 = arith.addf %24, %25 : vector<16x128xf32>
    %27 = arith.mulf %26, %19 : vector<16x128xf32>
    %cst_14 = arith.constant -0.284496725 : f32
    %28 = vector.broadcast %cst_14 : f32 to vector<16x128xf32>
    %29 = arith.addf %27, %28 : vector<16x128xf32>
    %30 = arith.mulf %29, %19 : vector<16x128xf32>
    %cst_15 = arith.constant 0.254829586 : f32
    %31 = vector.broadcast %cst_15 : f32 to vector<16x128xf32>
    %32 = arith.addf %30, %31 : vector<16x128xf32>
    %33 = arith.mulf %32, %19 : vector<16x128xf32>
    %cst_16 = arith.constant 0.000000e+00 : f32
    %34 = vector.broadcast %cst_16 : f32 to vector<16x128xf32>
    %35 = arith.subf %34, %13 : vector<16x128xf32>
    %36 = arith.mulf %35, %13 : vector<16x128xf32>
    %37 = math.exp %36 : vector<16x128xf32>
    %38 = arith.mulf %33, %37 : vector<16x128xf32>
    %cst_17 = arith.constant 1.000000e+00 : f32
    %39 = vector.broadcast %cst_17 : f32 to vector<16x128xf32>
    %40 = arith.subf %39, %38 : vector<16x128xf32>
    %cst_18 = arith.constant 0.000000e+00 : f32
    %41 = vector.broadcast %cst_18 : f32 to vector<16x128xf32>
    %42 = arith.cmpf oge, %12, %41 : vector<16x128xf32>
    %cst_19 = arith.constant 0.000000e+00 : f32
    %43 = vector.broadcast %cst_19 : f32 to vector<16x128xf32>
    %44 = arith.subf %43, %40 : vector<16x128xf32>
    %45 = arith.select %42, %40, %44 : vector<16x128xi1>, vector<16x128xf32>
    %cst_20 = arith.constant 1.000000e+00 : f32
    %46 = vector.broadcast %cst_20 : f32 to vector<16x128xf32>
    %47 = arith.addf %46, %45 : vector<16x128xf32>
    %48 = arith.mulf %10, %47 : vector<16x128xf32>
    %c0_21 = arith.constant 0 : index
    %c0_22 = arith.constant 0 : index
    %49 = vector.load %arg12[%c0_21, %c0_22] : memref<16x128xf32, #tpu.memory_space<vmem>>, vector<16x128xf32>
    %c0_23 = arith.constant 0 : index
    %c0_24 = arith.constant 0 : index
    %50 = vector.load %arg5[%c0_23, %c0_24] : memref<128x128xf32, #tpu.memory_space<vmem>>, vector<128x128xf32>
    %cst_25 = arith.constant dense<0.000000e+00> : vector<16x128xf32>
    %51 = tpu.matmul %48, %50, %cst_25 {dimension_numbers = #tpu.dot_dimension_numbers<[1], [0], [0], [1], [0, 0, 1, 1], [], []>} : vector<16x128xf32>, vector<128x128xf32>, vector<16x128xf32> -> vector<16x128xf32>
    %52 = arith.addf %49, %51 : vector<16x128xf32>
    %c0_26 = arith.constant 0 : index
    %c0_27 = arith.constant 0 : index
    %53 = vector.load %arg12[%c0_26, %c0_27] : memref<16x128xf32, #tpu.memory_space<vmem>>, vector<16x128xf32>
    tpu.vector_store %arg12[%c0_26, %c0_27], %52 {strides = array<i32>} : memref<16x128xf32, #tpu.memory_space<vmem>>, vector<16x128xf32>,
    %c0_i32_28 = arith.constant 0 : i32
    %54 = arith.cmpi eq, %arg1, %c0_i32_28 : i32
    %55 = arith.extui %54 : i1 to i32
    %c0_i32_29 = arith.constant 0 : i32
    %56 = arith.cmpi ne, %55, %c0_i32_29 : i32
    scf.if %56 {
      %c0_30 = arith.constant 0 : index
      %c0_31 = arith.constant 0 : index
      %57 = vector.load %arg12[%c0_30, %c0_31] : memref<16x128xf32, #tpu.memory_space<vmem>>, vector<16x128xf32>
      %c0_32 = arith.constant 0 : index
      %c0_33 = arith.constant 0 : index
      %58 = vector.load %arg6[%c0_32, %c0_33] : memref<1x128xf32, #tpu.memory_space<vmem>>, vector<1x128xf32>
      %59 = vector.broadcast %58 : vector<1x128xf32> to vector<16x128xf32>
      %60 = arith.addf %57, %59 : vector<16x128xf32>
      %c0_34 = arith.constant 0 : index
      %c0_35 = arith.constant 0 : index
      %61 = vector.load %arg7[%c0_34, %c0_35] : memref<128x128xf32, #tpu.memory_space<vmem>>, vector<128x128xf32>
      %cst_36 = arith.constant dense<0.000000e+00> : vector<16x128xf32>
      %62 = tpu.matmul %60, %61, %cst_36 {dimension_numbers = #tpu.dot_dimension_numbers<[1], [0], [0], [1], [0, 0, 1, 1], [], []>} : vector<16x128xf32>, vector<128x128xf32>, vector<16x128xf32> -> vector<16x128xf32>
      %c0_37 = arith.constant 0 : index
      %c0_38 = arith.constant 0 : index
      %63 = vector.load %arg8[%c0_37, %c0_38] : memref<1x128xf32, #tpu.memory_space<vmem>>, vector<1x128xf32>
      %64 = vector.broadcast %63 : vector<1x128xf32> to vector<16x128xf32>
      %65 = arith.addf %62, %64 : vector<16x128xf32>
      %cst_39 = arith.constant 0.000000e+00 : f32
      %66 = vector.broadcast %cst_39 : f32 to vector<16x128xf32>
      %67 = arith.maximumf %65, %66 : vector<16x128xf32>
      %c0_40 = arith.constant 0 : index
      %c0_41 = arith.constant 0 : index
      %68 = vector.load %arg9[%c0_40, %c0_41] : memref<128x128xf32, #tpu.memory_space<vmem>>, vector<128x128xf32>
      %cst_42 = arith.constant dense<0.000000e+00> : vector<16x128xf32>
      %69 = tpu.matmul %67, %68, %cst_42 {dimension_numbers = #tpu.dot_dimension_numbers<[1], [0], [0], [1], [0, 0, 1, 1], [], []>} : vector<16x128xf32>, vector<128x128xf32>, vector<16x128xf32> -> vector<16x128xf32>
      %c0_43 = arith.constant 0 : index
      %c0_44 = arith.constant 0 : index
      %70 = vector.load %arg10[%c0_43, %c0_44] : memref<1x128xf32, #tpu.memory_space<vmem>>, vector<1x128xf32>
      %71 = vector.broadcast %70 : vector<1x128xf32> to vector<16x128xf32>
      %72 = arith.addf %69, %71 : vector<16x128xf32>
      %73 = arith.addf %60, %72 : vector<16x128xf32>
      %c0_45 = arith.constant 0 : index
      %c0_46 = arith.constant 0 : index
      %74 = vector.load %arg11[%c0_45, %c0_46] : memref<16x128xf32, #tpu.memory_space<vmem>>, vector<16x128xf32>
      tpu.vector_store %arg11[%c0_45, %c0_46], %73 {strides = array<i32>} : memref<16x128xf32, #tpu.memory_space<vmem>>, vector<16x128xf32>,
    } else {
    }
    return
  }
  func.func @transform_0(%arg0: i32, %arg1: i32) -> (i32, i32) {
    %c0_i32 = arith.constant 0 : i32
    %c0_i32_0 = arith.constant 0 : i32
    return %arg0, %c0_i32 : i32, i32
  }
  func.func @transform_1(%arg0: i32, %arg1: i32) -> (i32, i32) {
    %c0_i32 = arith.constant 0 : i32
    %c0_i32_0 = arith.constant 0 : i32
    return %c0_i32, %arg1 : i32, i32
  }
  func.func @transform_2(%arg0: i32, %arg1: i32) -> (i32, i32) {
    %c0_i32 = arith.constant 0 : i32
    %c0_i32_0 = arith.constant 0 : i32
    return %c0_i32, %arg1 : i32, i32
  }
  func.func @transform_3(%arg0: i32, %arg1: i32) -> (i32, i32) {
    %c0_i32 = arith.constant 0 : i32
    %c0_i32_0 = arith.constant 0 : i32
    return %arg1, %c0_i32 : i32, i32
  }
  func.func @transform_4(%arg0: i32, %arg1: i32) -> (i32, i32) {
    %c0_i32 = arith.constant 0 : i32
    %c0_i32_0 = arith.constant 0 : i32
    %c0_i32_1 = arith.constant 0 : i32
    return %c0_i32, %c0_i32_0 : i32, i32
  }
  func.func @transform_5(%arg0: i32, %arg1: i32) -> (i32, i32) {
    %c0_i32 = arith.constant 0 : i32
    %c0_i32_0 = arith.constant 0 : i32
    %c0_i32_1 = arith.constant 0 : i32
    return %c0_i32, %c0_i32_0 : i32, i32
  }
  func.func @transform_6(%arg0: i32, %arg1: i32) -> (i32, i32) {
    %c0_i32 = arith.constant 0 : i32
    %c0_i32_0 = arith.constant 0 : i32
    %c0_i32_1 = arith.constant 0 : i32
    return %c0_i32, %c0_i32_0 : i32, i32
  }
  func.func @transform_7(%arg0: i32, %arg1: i32) -> (i32, i32) {
    %c0_i32 = arith.constant 0 : i32
    %c0_i32_0 = arith.constant 0 : i32
    %c0_i32_1 = arith.constant 0 : i32
    return %c0_i32, %c0_i32_0 : i32, i32
  }
  func.func @transform_8(%arg0: i32, %arg1: i32) -> (i32, i32) {
    %c0_i32 = arith.constant 0 : i32
    %c0_i32_0 = arith.constant 0 : i32
    %c0_i32_1 = arith.constant 0 : i32
    return %c0_i32, %c0_i32_0 : i32, i32
  }
  func.func @transform_9(%arg0: i32, %arg1: i32) -> (i32, i32) {
    %c0_i32 = arith.constant 0 : i32
    %c0_i32_0 = arith.constant 0 : i32
    return %arg0, %c0_i32 : i32, i32
  }
}

module attributes {stable_mosaic.version = 11 : i64} {
  func.func @_adapter_mlp_kernel(%arg0: i32, %arg1: i32, %arg2: memref<16x128xf32, #tpu.memory_space<vmem>>, %arg3: memref<128x128xf32, #tpu.memory_space<vmem>>, %arg4: memref<1x128xf32, #tpu.memory_space<vmem>>, %arg5: memref<128x128xf32, #tpu.memory_space<vmem>>, %arg6: memref<1x128xf32, #tpu.memory_space<vmem>>, %arg7: memref<128x128xf32, #tpu.memory_space<vmem>>, %arg8: memref<1x128xf32, #tpu.memory_space<vmem>>, %arg9: memref<128x128xf32, #tpu.memory_space<vmem>>, %arg10: memref<1x128xf32, #tpu.memory_space<vmem>>, %arg11: memref<16x128xf32, #tpu.memory_space<vmem>>, %arg12: memref<16x128xf32, #tpu.memory_space<vmem>>) attributes {dimension_semantics = [#tpu.dimension_semantics<parallel>, #tpu.dimension_semantics<arbitrary>], iteration_bounds = array<i64: 1, 1>, scalar_prefetch = 0 : i64, scratch_operands = 1 : i64, tpu.core_type = #tpu.core_type<tc>, window_params = [{transform_indices = @transform_0, window_bounds = array<i64: 16, 128>}, {transform_indices = @transform_1, window_bounds = array<i64: 128, 128>}, {transform_indices = @transform_2, window_bounds = array<i64: 1, 128>}, {transform_indices = @transform_3, window_bounds = array<i64: 128, 128>}, {pipeline_mode = #tpu.pipeline_mode<synchronous>, transform_indices = @transform_4, window_bounds = array<i64: 1, 128>}, {pipeline_mode = #tpu.pipeline_mode<synchronous>, transform_indices = @transform_5, window_bounds = array<i64: 128, 128>}, {pipeline_mode = #tpu.pipeline_mode<synchronous>, transform_indices = @transform_6, window_bounds = array<i64: 1, 128>}, {pipeline_mode = #tpu.pipeline_mode<synchronous>, transform_indices = @transform_7, window_bounds = array<i64: 128, 128>}, {pipeline_mode = #tpu.pipeline_mode<synchronous>, transform_indices = @transform_8, window_bounds = array<i64: 1, 128>}, {transform_indices = @transform_9, window_bounds = array<i64: 16, 128>}]} {
    %c0_i32 = arith.constant 0 : i32
    %0 = arith.cmpi eq, %arg1, %c0_i32 : i32
    %1 = arith.extui %0 : i1 to i32
    %c0_i32_0 = arith.constant 0 : i32
    %2 = arith.cmpi ne, %1, %c0_i32_0 : i32
    scf.if %2 {
      %cst_30 = arith.constant 0.000000e+00 : f32
      %57 = vector.broadcast %cst_30 : f32 to vector<16x128xf32>
      %c0_31 = arith.constant 0 : index
      %c0_32 = arith.constant 0 : index
      %58 = vector.load %arg12[%c0_31, %c0_32] : memref<16x128xf32, #tpu.memory_space<vmem>>, vector<16x128xf32>
      tpu.vector_store %arg12[%c0_31, %c0_32], %57 {strides = array<i32>} : memref<16x128xf32, #tpu.memory_space<vmem>>, vector<16x128xf32>,
    } else {
    }
    %c0 = arith.constant 0 : index
    %c0_1 = arith.constant 0 : index
    %3 = vector.load %arg2[%c0, %c0_1] : memref<16x128xf32, #tpu.memory_space<vmem>>, vector<16x128xf32>
    %c0_2 = arith.constant 0 : index
    %c0_3 = arith.constant 0 : index
    %4 = vector.load %arg3[%c0_2, %c0_3] : memref<128x128xf32, #tpu.memory_space<vmem>>, vector<128x128xf32>
    %cst = arith.constant dense<0.000000e+00> : vector<16x128xf32>
    %5 = tpu.matmul %3, %4, %cst {dimension_numbers = #tpu.dot_dimension_numbers<[1], [0], [0], [1], [0, 0, 1, 1], [], []>} : vector<16x128xf32>, vector<128x128xf32>, vector<16x128xf32> -> vector<16x128xf32>
    %c0_4 = arith.constant 0 : index
    %c0_5 = arith.constant 0 : index
    %6 = vector.load %arg4[%c0_4, %c0_5] : memref<1x128xf32, #tpu.memory_space<vmem>>, vector<1x128xf32>
    %7 = vector.broadcast %6 : vector<1x128xf32> to vector<16x128xf32>
    %8 = arith.addf %5, %7 : vector<16x128xf32>
    %cst_6 = arith.constant 5.000000e-01 : f32
    %9 = vector.broadcast %cst_6 : f32 to vector<16x128xf32>
    %10 = arith.mulf %9, %8 : vector<16x128xf32>
    %cst_7 = arith.constant 0.707106769 : f32
    %11 = vector.broadcast %cst_7 : f32 to vector<16x128xf32>
    %12 = arith.mulf %8, %11 : vector<16x128xf32>
    %13 = math.absf %12 : vector<16x128xf32>
    %cst_8 = arith.constant 0.327591091 : f32
    %14 = vector.broadcast %cst_8 : f32 to vector<16x128xf32>
    %15 = arith.mulf %14, %13 : vector<16x128xf32>
    %cst_9 = arith.constant 1.000000e+00 : f32
    %16 = vector.broadcast %cst_9 : f32 to vector<16x128xf32>
    %17 = arith.addf %16, %15 : vector<16x128xf32>
    %cst_10 = arith.constant 1.000000e+00 : f32
    %18 = vector.broadcast %cst_10 : f32 to vector<16x128xf32>
    %19 = arith.divf %18, %17 : vector<16x128xf32>
    %cst_11 = arith.constant 1.06140542 : f32
    %20 = vector.broadcast %cst_11 : f32 to vector<16x128xf32>
    %21 = arith.mulf %20, %19 : vector<16x128xf32>
    %cst_12 = arith.constant -1.45315206 : f32
    %22 = vector.broadcast %cst_12 : f32 to vector<16x128xf32>
    %23 = arith.addf %21, %22 : vector<16x128xf32>
    %24 = arith.mulf %23, %19 : vector<16x128xf32>
    %cst_13 = arith.constant 1.42141378 : f32
    %25 = vector.broadcast %cst_13 : f32 to vector<16x128xf32>
    %26 = arith.addf %24, %25 : vector<16x128xf32>
    %27 = arith.mulf %26, %19 : vector<16x128xf32>
    %cst_14 = arith.constant -0.284496725 : f32
    %28 = vector.broadcast %cst_14 : f32 to vector<16x128xf32>
    %29 = arith.addf %27, %28 : vector<16x128xf32>
    %30 = arith.mulf %29, %19 : vector<16x128xf32>
    %cst_15 = arith.constant 0.254829586 : f32
    %31 = vector.broadcast %cst_15 : f32 to vector<16x128xf32>
    %32 = arith.addf %30, %31 : vector<16x128xf32>
    %33 = arith.mulf %32, %19 : vector<16x128xf32>
    %cst_16 = arith.constant 0.000000e+00 : f32
    %34 = vector.broadcast %cst_16 : f32 to vector<16x128xf32>
    %35 = arith.subf %34, %13 : vector<16x128xf32>
    %36 = arith.mulf %35, %13 : vector<16x128xf32>
    %37 = math.exp %36 : vector<16x128xf32>
    %38 = arith.mulf %33, %37 : vector<16x128xf32>
    %cst_17 = arith.constant 1.000000e+00 : f32
    %39 = vector.broadcast %cst_17 : f32 to vector<16x128xf32>
    %40 = arith.subf %39, %38 : vector<16x128xf32>
    %cst_18 = arith.constant 0.000000e+00 : f32
    %41 = vector.broadcast %cst_18 : f32 to vector<16x128xf32>
    %42 = arith.cmpf oge, %12, %41 : vector<16x128xf32>
    %cst_19 = arith.constant 0.000000e+00 : f32
    %43 = vector.broadcast %cst_19 : f32 to vector<16x128xf32>
    %44 = arith.subf %43, %40 : vector<16x128xf32>
    %45 = arith.select %42, %40, %44 : vector<16x128xi1>, vector<16x128xf32>
    %cst_20 = arith.constant 1.000000e+00 : f32
    %46 = vector.broadcast %cst_20 : f32 to vector<16x128xf32>
    %47 = arith.addf %46, %45 : vector<16x128xf32>
    %48 = arith.mulf %10, %47 : vector<16x128xf32>
    %c0_21 = arith.constant 0 : index
    %c0_22 = arith.constant 0 : index
    %49 = vector.load %arg12[%c0_21, %c0_22] : memref<16x128xf32, #tpu.memory_space<vmem>>, vector<16x128xf32>
    %c0_23 = arith.constant 0 : index
    %c0_24 = arith.constant 0 : index
    %50 = vector.load %arg5[%c0_23, %c0_24] : memref<128x128xf32, #tpu.memory_space<vmem>>, vector<128x128xf32>
    %cst_25 = arith.constant dense<0.000000e+00> : vector<16x128xf32>
    %51 = tpu.matmul %48, %50, %cst_25 {dimension_numbers = #tpu.dot_dimension_numbers<[1], [0], [0], [1], [0, 0, 1, 1], [], []>} : vector<16x128xf32>, vector<128x128xf32>, vector<16x128xf32> -> vector<16x128xf32>
    %52 = arith.addf %49, %51 : vector<16x128xf32>
    %c0_26 = arith.constant 0 : index
    %c0_27 = arith.constant 0 : index
    %53 = vector.load %arg12[%c0_26, %c0_27] : memref<16x128xf32, #tpu.memory_space<vmem>>, vector<16x128xf32>
    tpu.vector_store %arg12[%c0_26, %c0_27], %52 {strides = array<i32>} : memref<16x128xf32, #tpu.memory_space<vmem>>, vector<16x128xf32>,
    %c0_i32_28 = arith.constant 0 : i32
    %54 = arith.cmpi eq, %arg1, %c0_i32_28 : i32
    %55 = arith.extui %54 : i1 to i32
    %c0_i32_29 = arith.constant 0 : i32
    %56 = arith.cmpi ne, %55, %c0_i32_29 : i32
    scf.if %56 {
      %c0_30 = arith.constant 0 : index
      %c0_31 = arith.constant 0 : index
      %57 = vector.load %arg12[%c0_30, %c0_31] : memref<16x128xf32, #tpu.memory_space<vmem>>, vector<16x128xf32>
      %c0_32 = arith.constant 0 : index
      %c0_33 = arith.constant 0 : index
      %58 = vector.load %arg6[%c0_32, %c0_33] : memref<1x128xf32, #tpu.memory_space<vmem>>, vector<1x128xf32>
      %59 = vector.broadcast %58 : vector<1x128xf32> to vector<16x128xf32>
      %60 = arith.addf %57, %59 : vector<16x128xf32>
      %c0_34 = arith.constant 0 : index
      %c0_35 = arith.constant 0 : index
      %61 = vector.load %arg7[%c0_34, %c0_35] : memref<128x128xf32, #tpu.memory_space<vmem>>, vector<128x128xf32>
      %cst_36 = arith.constant dense<0.000000e+00> : vector<16x128xf32>
      %62 = tpu.matmul %60, %61, %cst_36 {dimension_numbers = #tpu.dot_dimension_numbers<[1], [0], [0], [1], [0, 0, 1, 1], [], []>} : vector<16x128xf32>, vector<128x128xf32>, vector<16x128xf32> -> vector<16x128xf32>
      %c0_37 = arith.constant 0 : index
      %c0_38 = arith.constant 0 : index
      %63 = vector.load %arg8[%c0_37, %c0_38] : memref<1x128xf32, #tpu.memory_space<vmem>>, vector<1x128xf32>
      %64 = vector.broadcast %63 : vector<1x128xf32> to vector<16x128xf32>
      %65 = arith.addf %62, %64 : vector<16x128xf32>
      %cst_39 = arith.constant 0.000000e+00 : f32
      %66 = vector.broadcast %cst_39 : f32 to vector<16x128xf32>
      %67 = arith.maximumf %65, %66 : vector<16x128xf32>
      %c0_40 = arith.constant 0 : index
      %c0_41 = arith.constant 0 : index
      %68 = vector.load %arg9[%c0_40, %c0_41] : memref<128x128xf32, #tpu.memory_space<vmem>>, vector<128x128xf32>
      %cst_42 = arith.constant dense<0.000000e+00> : vector<16x128xf32>
      %69 = tpu.matmul %67, %68, %cst_42 {dimension_numbers = #tpu.dot_dimension_numbers<[1], [0], [0], [1], [0, 0, 1, 1], [], []>} : vector<16x128xf32>, vector<128x128xf32>, vector<16x128xf32> -> vector<16x128xf32>
      %c0_43 = arith.constant 0 : index
      %c0_44 = arith.constant 0 : index
      %70 = vector.load %arg10[%c0_43, %c0_44] : memref<1x128xf32, #tpu.memory_space<vmem>>, vector<1x128xf32>
      %71 = vector.broadcast %70 : vector<1x128xf32> to vector<16x128xf32>
      %72 = arith.addf %69, %71 : vector<16x128xf32>
      %73 = arith.addf %60, %72 : vector<16x128xf32>
      %c0_45 = arith.constant 0 : index
      %c0_46 = arith.constant 0 : index
      %74 = vector.load %arg11[%c0_45, %c0_46] : memref<16x128xf32, #tpu.memory_space<vmem>>, vector<16x128xf32>
      tpu.vector_store %arg11[%c0_45, %c0_46], %73 {strides = array<i32>} : memref<16x128xf32, #tpu.memory_space<vmem>>, vector<16x128xf32>,
    } else {
    }
    return
  }
  func.func @transform_0(%arg0: i32, %arg1: i32) -> (i32, i32) {
    %c0_i32 = arith.constant 0 : i32
    %c0_i32_0 = arith.constant 0 : i32
    return %arg0, %c0_i32 : i32, i32
  }
  func.func @transform_1(%arg0: i32, %arg1: i32) -> (i32, i32) {
    %c0_i32 = arith.constant 0 : i32
    %c0_i32_0 = arith.constant 0 : i32
    return %c0_i32, %arg1 : i32, i32
  }
  func.func @transform_2(%arg0: i32, %arg1: i32) -> (i32, i32) {
    %c0_i32 = arith.constant 0 : i32
    %c0_i32_0 = arith.constant 0 : i32
    return %c0_i32, %arg1 : i32, i32
  }
  func.func @transform_3(%arg0: i32, %arg1: i32) -> (i32, i32) {
    %c0_i32 = arith.constant 0 : i32
    %c0_i32_0 = arith.constant 0 : i32
    return %arg1, %c0_i32 : i32, i32
  }
  func.func @transform_4(%arg0: i32, %arg1: i32) -> (i32, i32) {
    %c0_i32 = arith.constant 0 : i32
    %c0_i32_0 = arith.constant 0 : i32
    %c0_i32_1 = arith.constant 0 : i32
    return %c0_i32, %c0_i32_0 : i32, i32
  }
  func.func @transform_5(%arg0: i32, %arg1: i32) -> (i32, i32) {
    %c0_i32 = arith.constant 0 : i32
    %c0_i32_0 = arith.constant 0 : i32
    %c0_i32_1 = arith.constant 0 : i32
    return %c0_i32, %c0_i32_0 : i32, i32
  }
  func.func @transform_6(%arg0: i32, %arg1: i32) -> (i32, i32) {
    %c0_i32 = arith.constant 0 : i32
    %c0_i32_0 = arith.constant 0 : i32
    %c0_i32_1 = arith.constant 0 : i32
    return %c0_i32, %c0_i32_0 : i32, i32
  }
  func.func @transform_7(%arg0: i32, %arg1: i32) -> (i32, i32) {
    %c0_i32 = arith.constant 0 : i32
    %c0_i32_0 = arith.constant 0 : i32
    %c0_i32_1 = arith.constant 0 : i32
    return %c0_i32, %c0_i32_0 : i32, i32
  }
  func.func @transform_8(%arg0: i32, %arg1: i32) -> (i32, i32) {
    %c0_i32 = arith.constant 0 : i32
    %c0_i32_0 = arith.constant 0 : i32
    %c0_i32_1 = arith.constant 0 : i32
    return %c0_i32, %c0_i32_0 : i32, i32
  }
  func.func @transform_9(%arg0: i32, %arg1: i32) -> (i32, i32) {
    %c0_i32 = arith.constant 0 : i32
    %c0_i32_0 = arith.constant 0 : i32
    return %arg0, %c0_i32 : i32, i32
  }
}

</mosaic_0001>

<llo_original>
// kernel: tpu_custom_call.1
$region0: #{tpu_custom_call.1}
  #allocation0 [shape = 'u32[]', space=smem, size = 0x4, offset = 0x4, fixed_abs, tag = 'smem constant byte address 0x4 - core index']
  #allocation1 [shape = 'u32[144,128]{1,0:T(1,128)}', space=vmem, size = 0x12000, scoped, tag = 'internal scratch']
  #allocation2 [shape = 'f32[16,128]{1,0:T(8,128)}', space=vmem, size = 0x2000, scoped, tag = 'scratch operand']
  %s0 = inlined_call_operand.hbm [shape: f32[16,128], index: 0, kind: input, shape index: {}]
  %s1 = inlined_call_operand.hbm [shape: f32[128,128], index: 1, kind: input, shape index: {}]
  %s2 = inlined_call_operand.vmem [shape: f32[1,128], index: 2, kind: input, shape index: {}]
  %s3 = inlined_call_operand.hbm [shape: f32[128,128], index: 3, kind: input, shape index: {}]
  %s4 = inlined_call_operand.vmem [shape: f32[1,128], index: 4, kind: input, shape index: {}]
  %s5 = inlined_call_operand.hbm [shape: f32[128,128], index: 5, kind: input, shape index: {}]
  %s6 = inlined_call_operand.vmem [shape: f32[1,128], index: 6, kind: input, shape index: {}]
  %s7 = inlined_call_operand.hbm [shape: f32[128,128], index: 7, kind: input, shape index: {}]
  %s8 = inlined_call_operand.vmem [shape: f32[1,128], index: 8, kind: input, shape index: {}]
  %s9 = inlined_call_operand.hbm [shape: f32[16,128], index: 9, kind: output, shape index: {}]
  %s10 = sld [smem:[#allocation0]]
  $region74: #{tpu_custom_call.1} parent=0
    _
  %s12 = ssub.s32 1, %s10
  %s13 = scalar_select 0, %s12, %s10
  $region1: #{tpu_custom_call.1} parent=0
    #allocation3 [shape = 'u8[8192]{0}', space=vmem, size = 0x2000, scoped, tag = 'input window, operand 0, single buffered']
    #allocation4 [shape = 's32[1]{0}', space=sflag, size = 0x4, scoped, tag = 'scoped memory for tpu_custom_call.1']
    #allocation5 [shape = 's32[1]{0}', space=sflag, size = 0x4, scoped, tag = 'scoped memory for tpu_custom_call.1']
    #allocation6 [shape = 'u8[65536]{0}', space=vmem, size = 0x10000, scoped, tag = 'input window, operand 1, single buffered']
    #allocation7 [shape = 's32[1]{0}', space=sflag, size = 0x4, scoped, tag = 'scoped memory for tpu_custom_call.1']
    #allocation8 [shape = 'u8[65536]{0}', space=vmem, size = 0x10000, scoped, tag = 'input window, operand 3, single buffered']
    #allocation9 [shape = 'u8[65536]{0}', space=vmem, size = 0x10000, scoped, tag = 'input window, operand 5, single buffered']
    #allocation10 [shape = 's32[1]{0}', space=sflag, size = 0x4, scoped, tag = 'scoped memory for tpu_custom_call.1']
    #allocation11 [shape = 'u8[65536]{0}', space=vmem, size = 0x10000, scoped, tag = 'input window, operand 7, single buffered']
    #allocation12 [shape = 'u8[8192]{0}', space=vmem, size = 0x2000, scoped, tag = 'output window, operand 0, single buffered']
    %14 = vsyncpa [#allocation4], 0
    %15 = vsyncpa [#allocation7], 0
    %16 = vsyncpa [#allocation10], 0
    %17 = vsyncpa [#allocation5], 0
    // Predicated region
    $region2: #{tpu_custom_call.1} parent=1 // pred_check
      _
    $region3: #{tpu_custom_call.1} parent=1 // pred_check_branch
      %19 = sbr.rel (0) target = $region5
    $region4: #{tpu_custom_call.1} parent=1 // pred_region
      %s21 = ssub.s32 256, 256
      %22 = vsyncadd [#allocation4], %s21
      %s23 = sshll.u32 [#allocation3], 4
      %s24 = int_to_ptr.vmem [resolvable:$true] %s23
      %29 = dma.hbm_to_vmem [thread:$0]  %s0, 256, %s24, [#allocation4], 128, 128, 8
    $region5: #{tpu_custom_call.1} parent=1 // pred_fallthru
      _
    // Predicated region
    $region6: #{tpu_custom_call.1} parent=1 // pred_check
      _
    $region7: #{tpu_custom_call.1} parent=1 // pred_check_branch
      %31 = sbr.rel (0) target = $region9
    $region8: #{tpu_custom_call.1} parent=1 // pred_region
      %s33 = ssub.s32 2048, 2048
      %34 = vsyncadd [#allocation7], %s33
      %s35 = sshll.u32 [#allocation6], 4
      %s36 = int_to_ptr.vmem [resolvable:$true] %s35
      %41 = dma.hbm_to_vmem [thread:$0]  %s1, 2048, %s36, [#allocation7], 128, 128, 8
    $region9: #{tpu_custom_call.1} parent=1 // pred_fallthru
      _
    // Predicated region
    $region10: #{tpu_custom_call.1} parent=1 // pred_check
      _
    $region11: #{tpu_custom_call.1} parent=1 // pred_check_branch
      %43 = sbr.rel (0) target = $region13
    $region12: #{tpu_custom_call.1} parent=1 // pred_region
      _
    $region13: #{tpu_custom_call.1} parent=1 // pred_fallthru
      _
    // Predicated region
    $region14: #{tpu_custom_call.1} parent=1 // pred_check
      _
    $region15: #{tpu_custom_call.1} parent=1 // pred_check_branch
      %45 = sbr.rel (0) target = $region17
    $region16: #{tpu_custom_call.1} parent=1 // pred_region
      %s47 = ssub.s32 2048, 2048
      %48 = vsyncadd [#allocation7], %s47
      %s49 = sshll.u32 [#allocation8], 4
      %s50 = int_to_ptr.vmem [resolvable:$true] %s49
      %55 = dma.hbm_to_vmem [thread:$0]  %s3, 2048, %s50, [#allocation7], 128, 128, 8
    $region17: #{tpu_custom_call.1} parent=1 // pred_fallthru
      _
    // Predicated region
    $region18: #{tpu_custom_call.1} parent=1 // pred_check
      _
    $region19: #{tpu_custom_call.1} parent=1 // pred_check_branch
      %57 = sbr.rel (0) target = $region21
    $region20: #{tpu_custom_call.1} parent=1 // pred_region
      _
    $region21: #{tpu_custom_call.1} parent=1 // pred_fallthru
      _
    // Predicated region
    $region22: #{tpu_custom_call.1} parent=1 // pred_check
      _
    $region23: #{tpu_custom_call.1} parent=1 // pred_check_branch
      %59 = sbr.rel (0) target = $region25
    $region24: #{tpu_custom_call.1} parent=1 // pred_region
      %s61 = ssub.s32 2048, 2048
      %62 = vsyncadd [#allocation10], %s61
      %s63 = sshll.u32 [#allocation9], 4
      %s64 = int_to_ptr.vmem [resolvable:$true] %s63
      %69 = dma.hbm_to_vmem [thread:$0]  %s5, 2048, %s64, [#allocation10], 128, 128, 8
    $region25: #{tpu_custom_call.1} parent=1 // pred_fallthru
      _
    // Predicated region
    $region26: #{tpu_custom_call.1} parent=1 // pred_check
      _
    $region27: #{tpu_custom_call.1} parent=1 // pred_check_branch
      %71 = sbr.rel (0) target = $region29
    $region28: #{tpu_custom_call.1} parent=1 // pred_region
      _
    $region29: #{tpu_custom_call.1} parent=1 // pred_fallthru
      _
    // Predicated region
    $region30: #{tpu_custom_call.1} parent=1 // pred_check
      _
    $region31: #{tpu_custom_call.1} parent=1 // pred_check_branch
      %73 = sbr.rel (0) target = $region33
    $region32: #{tpu_custom_call.1} parent=1 // pred_region
      %s75 = ssub.s32 2048, 2048
      %76 = vsyncadd [#allocation10], %s75
      %s77 = sshll.u32 [#allocation11], 4
      %s78 = int_to_ptr.vmem [resolvable:$true] %s77
      %83 = dma.hbm_to_vmem [thread:$0]  %s7, 2048, %s78, [#allocation10], 128, 128, 8
    $region33: #{tpu_custom_call.1} parent=1 // pred_fallthru
      _
    // Predicated region
    $region34: #{tpu_custom_call.1} parent=1 // pred_check
      _
    $region35: #{tpu_custom_call.1} parent=1 // pred_check_branch
      %85 = sbr.rel (0) target = $region37
    $region36: #{tpu_custom_call.1} parent=1 // pred_region
      _
    $region37: #{tpu_custom_call.1} parent=1 // pred_fallthru
      _
    // Predicated region
    $region38: #{tpu_custom_call.1} parent=1 // pred_check
      _
    $region39: #{tpu_custom_call.1} parent=1 // pred_check_branch
      %87 = sbr.rel (0) target = $region41
    $region40: #{tpu_custom_call.1} parent=1 // pred_region
      %88 = dma.done [#allocation4], 256
    $region41: #{tpu_custom_call.1} parent=1 // pred_fallthru
      _
    // Predicated region
    $region42: #{tpu_custom_call.1} parent=1 // pred_check
      _
    $region43: #{tpu_custom_call.1} parent=1 // pred_check_branch
      %90 = sbr.rel (0) target = $region45
    $region44: #{tpu_custom_call.1} parent=1 // pred_region
      %91 = dma.done [#allocation7], 2048
    $region45: #{tpu_custom_call.1} parent=1 // pred_fallthru
      _
    // Predicated region
    $region46: #{tpu_custom_call.1} parent=1 // pred_check
      _
    $region47: #{tpu_custom_call.1} parent=1 // pred_check_branch
      %93 = sbr.rel (0) target = $region49
    $region48: #{tpu_custom_call.1} parent=1 // pred_region
      %94 = dma.done [#allocation7], 2048
    $region49: #{tpu_custom_call.1} parent=1 // pred_fallthru
      _
    // Predicated region
    $region50: #{tpu_custom_call.1} parent=1 // pred_check
      _
    $region51: #{tpu_custom_call.1} parent=1 // pred_check_branch
      %96 = sbr.rel (0) target = $region53
    $region52: #{tpu_custom_call.1} parent=1 // pred_region
      %97 = dma.done [#allocation10], 2048
    $region53: #{tpu_custom_call.1} parent=1 // pred_fallthru
      _
    // Predicated region
    $region54: #{tpu_custom_call.1} parent=1 // pred_check
      _
    $region55: #{tpu_custom_call.1} parent=1 // pred_check_branch
      %99 = sbr.rel (0) target = $region57
    $region56: #{tpu_custom_call.1} parent=1 // pred_region
      %100 = dma.done [#allocation10], 2048
    $region57: #{tpu_custom_call.1} parent=1 // pred_fallthru
      _
    %p101 = scmp.eq.s32.totalorder 0, 0
    // Predicated region
    $region58: #{tpu_custom_call.1} parent=1 // pred_check
      %p102 = pneg %p101
    $region59: #{tpu_custom_call.1} parent=1 // pred_check_branch
      %104 = sbr.rel (%p102) target = $region61
    $region60: #{tpu_custom_call.1} parent=1 // pred_region
      %105 = vst [vmem:[#allocation2] sm:$0xff] 0.0
      %106 = vst [vmem:[#allocation2 + $0x8] sm:$0xff] 0.0
    $region61: #{tpu_custom_call.1} parent=1 // pred_fallthru
      _
    %v107 = vld [vmem:[#allocation3] sm:$0xff]
    %v108 = vld [vmem:[#allocation3 + $0x8] sm:$0xff]
    %v109 = vld [vmem:[#allocation6] sm:$0xff]
    %v110 = vld [vmem:[#allocation6 + $0x8] sm:$0xff]
    %v111 = vld [vmem:[#allocation6 + $0x10] sm:$0xff]
    %v112 = vld [vmem:[#allocation6 + $0x18] sm:$0xff]
    %v113 = vld [vmem:[#allocation6 + $0x20] sm:$0xff]
    %v114 = vld [vmem:[#allocation6 + $0x28] sm:$0xff]
    %v115 = vld [vmem:[#allocation6 + $0x30] sm:$0xff]
    %v116 = vld [vmem:[#allocation6 + $0x38] sm:$0xff]
    %v117 = vld [vmem:[#allocation6 + $0x40] sm:$0xff]
    %v118 = vld [vmem:[#allocation6 + $0x48] sm:$0xff]
    %v119 = vld [vmem:[#allocation6 + $0x50] sm:$0xff]
    %v120 = vld [vmem:[#allocation6 + $0x58] sm:$0xff]
    %v121 = vld [vmem:[#allocation6 + $0x60] sm:$0xff]
    %v122 = vld [vmem:[#allocation6 + $0x68] sm:$0xff]
    %v123 = vld [vmem:[#allocation6 + $0x70] sm:$0xff]
    %v124 = vld [vmem:[#allocation6 + $0x78] sm:$0xff]
    %v125 = vld [vmem:[%s2] sm:$0x1]
    %v127 = vlaneseq
    %v128 = vshrl.u32 %v127, 7
    %v129 = vsub.s32 0, %v128
    %v130 = vrot.slane %v125, %v129
    %132 = vmatprep.subr.mxu0 0.0
    %133 = vmatpush1.msra.mxu0 %v124
    %134 = vmatprep.subr.mxu0 0.0
    %135 = vmatpush1.msra.mxu0 %v123
    %136 = vmatprep.subr.mxu0 0.0
    %137 = vmatpush1.msra.mxu0 %v122
    %138 = vmatprep.subr.mxu0 0.0
    %139 = vmatpush1.msra.mxu0 %v121
    %140 = vmatprep.subr.mxu0 0.0
    %141 = vmatpush1.msra.mxu0 %v120
    %142 = vmatprep.subr.mxu0 0.0
    %143 = vmatpush1.msra.mxu0 %v119
    %144 = vmatprep.subr.mxu0 0.0
    %145 = vmatpush1.msra.mxu0 %v118
    %146 = vmatprep.subr.mxu0 0.0
    %147 = vmatpush1.msra.mxu0 %v117
    %148 = vmatprep.subr.mxu0 0.0
    %149 = vmatpush1.msra.mxu0 %v116
    %150 = vmatprep.subr.mxu0 0.0
    %151 = vmatpush1.msra.mxu0 %v115
    %152 = vmatprep.subr.mxu0 0.0
    %153 = vmatpush1.msra.mxu0 %v114
    %154 = vmatprep.subr.mxu0 0.0
    %155 = vmatpush1.msra.mxu0 %v113
    %156 = vmatprep.subr.mxu0 0.0
    %157 = vmatpush1.msra.mxu0 %v112
    %158 = vmatprep.subr.mxu0 0.0
    %159 = vmatpush1.msra.mxu0 %v111
    %160 = vmatprep.subr.mxu0 0.0
    %161 = vmatpush1.msra.mxu0 %v110
    %162 = vmatprep.subr.mxu0 0.0
    %163 = vmatpush1.msra.mxu0 %v109
    %164 = vmatprep.subr.mxu0 0.0
    %165 = vmatpush2.msra.mxu0 0.0
    %166 = vmatprep.subr.mxu0 0.0
    %167 = vmatpush2.msra.mxu0 0.0
    %168 = vmatprep.subr.mxu0 0.0
    %169 = vmatpush2.msra.mxu0 0.0
    %170 = vmatprep.subr.mxu0 0.0
    %171 = vmatpush2.msra.mxu0 0.0
    %172 = vmatprep.subr.mxu0 0.0
    %173 = vmatpush2.msra.mxu0 0.0
    %174 = vmatprep.subr.mxu0 0.0
    %175 = vmatpush2.msra.mxu0 0.0
    %176 = vmatprep.subr.mxu0 0.0
    %177 = vmatpush2.msra.mxu0 0.0
    %178 = vmatprep.subr.mxu0 0.0
    %179 = vmatpush2.msra.mxu0 0.0
    %180 = vmatprep.subr.mxu0 0.0
    %181 = vmatpush2.msra.mxu0 0.0
    %182 = vmatprep.subr.mxu0 0.0
    %183 = vmatpush2.msra.mxu0 0.0
    %184 = vmatprep.subr.mxu0 0.0
    %185 = vmatpush2.msra.mxu0 0.0
    %186 = vmatprep.subr.mxu0 0.0
    %187 = vmatpush2.msra.mxu0 0.0
    %188 = vmatprep.subr.mxu0 0.0
    %189 = vmatpush2.msra.mxu0 0.0
    %190 = vmatprep.subr.mxu0 0.0
    %191 = vmatpush2.msra.mxu0 0.0
    %192 = vmatprep.subr.mxu0 0.0
    %193 = vmatpush2.msra.mxu0 0.0
    %194 = vmatprep.subr.mxu0 0.0
    %195 = vmatpush2.msra.mxu0 0.0
    %196 = vmatprep.mubr.f32.mxu0 0.0
    %197 = vmatmul.mubr.f32.gmra.mxu0 %v107
    %v198 = vpop.f32.mrf.mxu0
    %v199 = vadd.f32 %v130, %v198
    %v200 = vpop.f32.mrf.mxu0
    %201 = vmatprep.mubr.f32.mxu0 0.0
    %202 = vmatmul.mubr.f32.gmra.mxu0 %v108
    %v203 = vpop.f32.mrf.mxu0
    %v204 = vadd.f32 %v130, %v203
    %v205 = vpop.f32.mrf.mxu0
    %206 = vdwg.mxu0
    %v207 = vmul.f32 %v199, 0.5
    %v208 = vmul.f32 %v204, 0.5
    %v209 = vmul.f32 %v199, 0.70710677
    %v210 = vmul.f32 %v204, 0.70710677
    %v211 = vand.u32 2147483647, %v209
    %v212 = vand.u32 2147483647, %v210
    %v213 = vmul.f32 %v211, 0.3275911
    %v214 = vmul.f32 %v212, 0.3275911
    %v215 = vadd.f32 %v213, 1.0
    %v216 = vadd.f32 %v214, 1.0
    %v217 = vrcp.pop %v215
    %v218 = vmul.f32 1.0, %v217
    %v219 = vrcp.pop %v216
    %v220 = vmul.f32 1.0, %v219
    %v221 = vmul.f32 %v218, 1.0614054
    %v222 = vmul.f32 %v220, 1.0614054
    %v223 = vadd.f32 %v221, -1.4531521
    %v224 = vadd.f32 %v222, -1.4531521
    %v225 = vmul.f32 %v223, %v218
    %v226 = vmul.f32 %v224, %v220
    %v227 = vadd.f32 %v225, 1.4214138
    %v228 = vadd.f32 %v226, 1.4214138
    %v229 = vmul.f32 %v227, %v218
    %v230 = vmul.f32 %v228, %v220
    %v231 = vadd.f32 %v229, -0.28449672
    %v232 = vadd.f32 %v230, -0.28449672
    %v233 = vmul.f32 %v231, %v218
    %v234 = vmul.f32 %v232, %v220
    %v235 = vadd.f32 %v233, 0.2548296
    %v236 = vadd.f32 %v234, 0.2548296
    %v237 = vmul.f32 %v235, %v218
    %v238 = vmul.f32 %v236, %v220
    %v239 = vsub.f32 0.0, %v211
    %v240 = vsub.f32 0.0, %v212
    %v241 = vmul.f32 %v239, %v211
    %v242 = vmul.f32 %v240, %v212
    %v243 = vmul.f32 %v241, 1.442695
    %v244 = vpow.pop %v243
    %v245 = vmul.f32 %v242, 1.442695
    %v246 = vpow.pop %v245
    %v247 = vmul.f32 %v237, %v244
    %v248 = vmul.f32 %v238, %v246
    %v249 = vsub.f32 1.0, %v247
    %v250 = vsub.f32 1.0, %v248
    %vm251 = vcmp.ge.f32.partialorder %v209, 0.0
    %vm252 = vcmp.ge.f32.partialorder %v210, 0.0
    %v253 = vsub.f32 0.0, %v249
    %v254 = vsub.f32 0.0, %v250
    %v255 = vsel %vm251, %v249, %v253
    %v256 = vsel %vm252, %v250, %v254
    %v257 = vadd.f32 %v255, 1.0
    %v258 = vadd.f32 %v256, 1.0
    %v259 = vmul.f32 %v207, %v257
    %v260 = vmul.f32 %v208, %v258
    %v261 = vld [vmem:[#allocation2] sm:$0xff]
    %v262 = vld [vmem:[#allocation2 + $0x8] sm:$0xff]
    %v263 = vld [vmem:[#allocation8] sm:$0xff]
    %v264 = vld [vmem:[#allocation8 + $0x8] sm:$0xff]
    %v265 = vld [vmem:[#allocation8 + $0x10] sm:$0xff]
    %v266 = vld [vmem:[#allocation8 + $0x18] sm:$0xff]
    %v267 = vld [vmem:[#allocation8 + $0x20] sm:$0xff]
    %v268 = vld [vmem:[#allocation8 + $0x28] sm:$0xff]
    %v269 = vld [vmem:[#allocation8 + $0x30] sm:$0xff]
    %v270 = vld [vmem:[#allocation8 + $0x38] sm:$0xff]
    %v271 = vld [vmem:[#allocation8 + $0x40] sm:$0xff]
    %v272 = vld [vmem:[#allocation8 + $0x48] sm:$0xff]
    %v273 = vld [vmem:[#allocation8 + $0x50] sm:$0xff]
    %v274 = vld [vmem:[#allocation8 + $0x58] sm:$0xff]
    %v275 = vld [vmem:[#allocation8 + $0x60] sm:$0xff]
    %v276 = vld [vmem:[#allocation8 + $0x68] sm:$0xff]
    %v277 = vld [vmem:[#allocation8 + $0x70] sm:$0xff]
    %v278 = vld [vmem:[#allocation8 + $0x78] sm:$0xff]
    %279 = vmatprep.subr.mxu0 0.0
    %280 = vmatpush1.msra.mxu0 %v278
    %281 = vmatprep.subr.mxu0 0.0
    %282 = vmatpush1.msra.mxu0 %v277
    %283 = vmatprep.subr.mxu0 0.0
    %284 = vmatpush1.msra.mxu0 %v276
    %285 = vmatprep.subr.mxu0 0.0
    %286 = vmatpush1.msra.mxu0 %v275
    %287 = vmatprep.subr.mxu0 0.0
    %288 = vmatpush1.msra.mxu0 %v274
    %289 = vmatprep.subr.mxu0 0.0
    %290 = vmatpush1.msra.mxu0 %v273
    %291 = vmatprep.subr.mxu0 0.0
    %292 = vmatpush1.msra.mxu0 %v272
    %293 = vmatprep.subr.mxu0 0.0
    %294 = vmatpush1.msra.mxu0 %v271
    %295 = vmatprep.subr.mxu0 0.0
    %296 = vmatpush1.msra.mxu0 %v270
    %297 = vmatprep.subr.mxu0 0.0
    %298 = vmatpush1.msra.mxu0 %v269
    %299 = vmatprep.subr.mxu0 0.0
    %300 = vmatpush1.msra.mxu0 %v268
    %301 = vmatprep.subr.mxu0 0.0
    %302 = vmatpush1.msra.mxu0 %v267
    %303 = vmatprep.subr.mxu0 0.0
    %304 = vmatpush1.msra.mxu0 %v266
    %305 = vmatprep.subr.mxu0 0.0
    %306 = vmatpush1.msra.mxu0 %v265
    %307 = vmatprep.subr.mxu0 0.0
    %308 = vmatpush1.msra.mxu0 %v264
    %309 = vmatprep.subr.mxu0 0.0
    %310 = vmatpush1.msra.mxu0 %v263
    %311 = vmatprep.subr.mxu0 0.0
    %312 = vmatpush2.msra.mxu0 0.0
    %313 = vmatprep.subr.mxu0 0.0
    %314 = vmatpush2.msra.mxu0 0.0
    %315 = vmatprep.subr.mxu0 0.0
    %316 = vmatpush2.msra.mxu0 0.0
    %317 = vmatprep.subr.mxu0 0.0
    %318 = vmatpush2.msra.mxu0 0.0
    %319 = vmatprep.subr.mxu0 0.0
    %320 = vmatpush2.msra.mxu0 0.0
    %321 = vmatprep.subr.mxu0 0.0
    %322 = vmatpush2.msra.mxu0 0.0
    %323 = vmatprep.subr.mxu0 0.0
    %324 = vmatpush2.msra.mxu0 0.0
    %325 = vmatprep.subr.mxu0 0.0
    %326 = vmatpush2.msra.mxu0 0.0
    %327 = vmatprep.subr.mxu0 0.0
    %328 = vmatpush2.msra.mxu0 0.0
    %329 = vmatprep.subr.mxu0 0.0
    %330 = vmatpush2.msra.mxu0 0.0
    %331 = vmatprep.subr.mxu0 0.0
    %332 = vmatpush2.msra.mxu0 0.0
    %333 = vmatprep.subr.mxu0 0.0
    %334 = vmatpush2.msra.mxu0 0.0
    %335 = vmatprep.subr.mxu0 0.0
    %336 = vmatpush2.msra.mxu0 0.0
    %337 = vmatprep.subr.mxu0 0.0
    %338 = vmatpush2.msra.mxu0 0.0
    %339 = vmatprep.subr.mxu0 0.0
    %340 = vmatpush2.msra.mxu0 0.0
    %341 = vmatprep.subr.mxu0 0.0
    %342 = vmatpush2.msra.mxu0 0.0
    %343 = vmatprep.mubr.f32.mxu0 0.0
    %344 = vmatmul.mubr.f32.gmra.mxu0 %v259
    %v345 = vpop.f32.mrf.mxu0
    %v346 = vadd.f32 0.0, %v345
    %v347 = vpop.f32.mrf.mxu0
    %348 = vmatprep.mubr.f32.mxu0 0.0
    %349 = vmatmul.mubr.f32.gmra.mxu0 %v260
    %v350 = vpop.f32.mrf.mxu0
    %v351 = vadd.f32 0.0, %v350
    %v352 = vpop.f32.mrf.mxu0
    %353 = vdwg.mxu0
    %v354 = vadd.f32 %v261, %v346
    %v355 = vadd.f32 %v262, %v351
    %356 = vst [vmem:[#allocation2] sm:$0xff] %v354
    %357 = vst [vmem:[#allocation2 + $0x8] sm:$0xff] %v355
    // Predicated region
    $region62: #{tpu_custom_call.1} parent=1 // pred_check
      %p358 = pneg %p101
    $region63: #{tpu_custom_call.1} parent=1 // pred_check_branch
      %360 = sbr.rel (%p358) target = $region65
    $region64: #{tpu_custom_call.1} parent=1 // pred_region
      %v361 = vld [vmem:[#allocation2] sm:$0xff]
      %v362 = vld [vmem:[#allocation2 + $0x8] sm:$0xff]
      %v363 = vld [vmem:[%s4] sm:$0x1]
      %v365 = vlaneseq
      %v366 = vshrl.u32 %v365, 7
      %v367 = vsub.s32 0, %v366
      %v368 = vrot.slane %v363, %v367
      %v370 = vadd.f32 %v361, %v368
      %v371 = vadd.f32 %v362, %v368
      %v372 = vld [vmem:[#allocation9] sm:$0xff]
      %v373 = vld [vmem:[#allocation9 + $0x8] sm:$0xff]
      %v374 = vld [vmem:[#allocation9 + $0x10] sm:$0xff]
      %v375 = vld [vmem:[#allocation9 + $0x18] sm:$0xff]
      %v376 = vld [vmem:[#allocation9 + $0x20] sm:$0xff]
      %v377 = vld [vmem:[#allocation9 + $0x28] sm:$0xff]
      %v378 = vld [vmem:[#allocation9 + $0x30] sm:$0xff]
      %v379 = vld [vmem:[#allocation9 + $0x38] sm:$0xff]
      %v380 = vld [vmem:[#allocation9 + $0x40] sm:$0xff]
      %v381 = vld [vmem:[#allocation9 + $0x48] sm:$0xff]
      %v382 = vld [vmem:[#allocation9 + $0x50] sm:$0xff]
      %v383 = vld [vmem:[#allocation9 + $0x58] sm:$0xff]
      %v384 = vld [vmem:[#allocation9 + $0x60] sm:$0xff]
      %v385 = vld [vmem:[#allocation9 + $0x68] sm:$0xff]
      %v386 = vld [vmem:[#allocation9 + $0x70] sm:$0xff]
      %v387 = vld [vmem:[#allocation9 + $0x78] sm:$0xff]
      %v388 = vld [vmem:[%s6] sm:$0x1]
      %v390 = vlaneseq
      %v391 = vshrl.u32 %v390, 7
      %v392 = vsub.s32 0, %v391
      %v393 = vrot.slane %v388, %v392
      %395 = vmatprep.subr.mxu0 0.0
      %396 = vmatpush1.msra.mxu0 %v387
      %397 = vmatprep.subr.mxu0 0.0
      %398 = vmatpush1.msra.mxu0 %v386
      %399 = vmatprep.subr.mxu0 0.0
      %400 = vmatpush1.msra.mxu0 %v385
      %401 = vmatprep.subr.mxu0 0.0
      %402 = vmatpush1.msra.mxu0 %v384
      %403 = vmatprep.subr.mxu0 0.0
      %404 = vmatpush1.msra.mxu0 %v383
      %405 = vmatprep.subr.mxu0 0.0
      %406 = vmatpush1.msra.mxu0 %v382
      %407 = vmatprep.subr.mxu0 0.0
      %408 = vmatpush1.msra.mxu0 %v381
      %409 = vmatprep.subr.mxu0 0.0
      %410 = vmatpush1.msra.mxu0 %v380
      %411 = vmatprep.subr.mxu0 0.0
      %412 = vmatpush1.msra.mxu0 %v379
      %413 = vmatprep.subr.mxu0 0.0
      %414 = vmatpush1.msra.mxu0 %v378
      %415 = vmatprep.subr.mxu0 0.0
      %416 = vmatpush1.msra.mxu0 %v377
      %417 = vmatprep.subr.mxu0 0.0
      %418 = vmatpush1.msra.mxu0 %v376
      %419 = vmatprep.subr.mxu0 0.0
      %420 = vmatpush1.msra.mxu0 %v375
      %421 = vmatprep.subr.mxu0 0.0
      %422 = vmatpush1.msra.mxu0 %v374
      %423 = vmatprep.subr.mxu0 0.0
      %424 = vmatpush1.msra.mxu0 %v373
      %425 = vmatprep.subr.mxu0 0.0
      %426 = vmatpush1.msra.mxu0 %v372
      %427 = vmatprep.subr.mxu0 0.0
      %428 = vmatpush2.msra.mxu0 0.0
      %429 = vmatprep.subr.mxu0 0.0
      %430 = vmatpush2.msra.mxu0 0.0
      %431 = vmatprep.subr.mxu0 0.0
      %432 = vmatpush2.msra.mxu0 0.0
      %433 = vmatprep.subr.mxu0 0.0
      %434 = vmatpush2.msra.mxu0 0.0
      %435 = vmatprep.subr.mxu0 0.0
      %436 = vmatpush2.msra.mxu0 0.0
      %437 = vmatprep.subr.mxu0 0.0
      %438 = vmatpush2.msra.mxu0 0.0
      %439 = vmatprep.subr.mxu0 0.0
      %440 = vmatpush2.msra.mxu0 0.0
      %441 = vmatprep.subr.mxu0 0.0
      %442 = vmatpush2.msra.mxu0 0.0
      %443 = vmatprep.subr.mxu0 0.0
      %444 = vmatpush2.msra.mxu0 0.0
      %445 = vmatprep.subr.mxu0 0.0
      %446 = vmatpush2.msra.mxu0 0.0
      %447 = vmatprep.subr.mxu0 0.0
      %448 = vmatpush2.msra.mxu0 0.0
      %449 = vmatprep.subr.mxu0 0.0
      %450 = vmatpush2.msra.mxu0 0.0
      %451 = vmatprep.subr.mxu0 0.0
      %452 = vmatpush2.msra.mxu0 0.0
      %453 = vmatprep.subr.mxu0 0.0
      %454 = vmatpush2.msra.mxu0 0.0
      %455 = vmatprep.subr.mxu0 0.0
      %456 = vmatpush2.msra.mxu0 0.0
      %457 = vmatprep.subr.mxu0 0.0
      %458 = vmatpush2.msra.mxu0 0.0
      %459 = vmatprep.mubr.f32.mxu0 0.0
      %460 = vmatmul.mubr.f32.gmra.mxu0 %v370
      %v461 = vpop.f32.mrf.mxu0
      %v462 = vadd.f32 %v393, %v461
      %v463 = vpop.f32.mrf.mxu0
      %464 = vmatprep.mubr.f32.mxu0 0.0
      %465 = vmatmul.mubr.f32.gmra.mxu0 %v371
      %v466 = vpop.f32.mrf.mxu0
      %v467 = vadd.f32 %v393, %v466
      %v468 = vpop.f32.mrf.mxu0
      %469 = vdwg.mxu0
      %v470 = vmax.f32 %v462, 0.0
      %v471 = vmax.f32 %v467, 0.0
      %v472 = vld [vmem:[#allocation11] sm:$0xff]
      %v473 = vld [vmem:[#allocation11 + $0x8] sm:$0xff]
      %v474 = vld [vmem:[#allocation11 + $0x10] sm:$0xff]
      %v475 = vld [vmem:[#allocation11 + $0x18] sm:$0xff]
      %v476 = vld [vmem:[#allocation11 + $0x20] sm:$0xff]
      %v477 = vld [vmem:[#allocation11 + $0x28] sm:$0xff]
      %v478 = vld [vmem:[#allocation11 + $0x30] sm:$0xff]
      %v479 = vld [vmem:[#allocation11 + $0x38] sm:$0xff]
      %v480 = vld [vmem:[#allocation11 + $0x40] sm:$0xff]
      %v481 = vld [vmem:[#allocation11 + $0x48] sm:$0xff]
      %v482 = vld [vmem:[#allocation11 + $0x50] sm:$0xff]
      %v483 = vld [vmem:[#allocation11 + $0x58] sm:$0xff]
      %v484 = vld [vmem:[#allocation11 + $0x60] sm:$0xff]
      %v485 = vld [vmem:[#allocation11 + $0x68] sm:$0xff]
      %v486 = vld [vmem:[#allocation11 + $0x70] sm:$0xff]
      %v487 = vld [vmem:[#allocation11 + $0x78] sm:$0xff]
      %v488 = vld [vmem:[%s8] sm:$0x1]
      %v490 = vlaneseq
      %v491 = vshrl.u32 %v490, 7
      %v492 = vsub.s32 0, %v491
      %v493 = vrot.slane %v488, %v492
      %495 = vmatprep.subr.mxu0 0.0
      %496 = vmatpush1.msra.mxu0 %v487
      %497 = vmatprep.subr.mxu0 0.0
      %498 = vmatpush1.msra.mxu0 %v486
      %499 = vmatprep.subr.mxu0 0.0
      %500 = vmatpush1.msra.mxu0 %v485
      %501 = vmatprep.subr.mxu0 0.0
      %502 = vmatpush1.msra.mxu0 %v484
      %503 = vmatprep.subr.mxu0 0.0
      %504 = vmatpush1.msra.mxu0 %v483
      %505 = vmatprep.subr.mxu0 0.0
      %506 = vmatpush1.msra.mxu0 %v482
      %507 = vmatprep.subr.mxu0 0.0
      %508 = vmatpush1.msra.mxu0 %v481
      %509 = vmatprep.subr.mxu0 0.0
      %510 = vmatpush1.msra.mxu0 %v480
      %511 = vmatprep.subr.mxu0 0.0
      %512 = vmatpush1.msra.mxu0 %v479
      %513 = vmatprep.subr.mxu0 0.0
      %514 = vmatpush1.msra.mxu0 %v478
      %515 = vmatprep.subr.mxu0 0.0
      %516 = vmatpush1.msra.mxu0 %v477
      %517 = vmatprep.subr.mxu0 0.0
      %518 = vmatpush1.msra.mxu0 %v476
      %519 = vmatprep.subr.mxu0 0.0
      %520 = vmatpush1.msra.mxu0 %v475
      %521 = vmatprep.subr.mxu0 0.0
      %522 = vmatpush1.msra.mxu0 %v474
      %523 = vmatprep.subr.mxu0 0.0
      %524 = vmatpush1.msra.mxu0 %v473
      %525 = vmatprep.subr.mxu0 0.0
      %526 = vmatpush1.msra.mxu0 %v472
      %527 = vmatprep.subr.mxu0 0.0
      %528 = vmatpush2.msra.mxu0 0.0
      %529 = vmatprep.subr.mxu0 0.0
      %530 = vmatpush2.msra.mxu0 0.0
      %531 = vmatprep.subr.mxu0 0.0
      %532 = vmatpush2.msra.mxu0 0.0
      %533 = vmatprep.subr.mxu0 0.0
      %534 = vmatpush2.msra.mxu0 0.0
      %535 = vmatprep.subr.mxu0 0.0
      %536 = vmatpush2.msra.mxu0 0.0
      %537 = vmatprep.subr.mxu0 0.0
      %538 = vmatpush2.msra.mxu0 0.0
      %539 = vmatprep.subr.mxu0 0.0
      %540 = vmatpush2.msra.mxu0 0.0
      %541 = vmatprep.subr.mxu0 0.0
      %542 = vmatpush2.msra.mxu0 0.0
      %543 = vmatprep.subr.mxu0 0.0
      %544 = vmatpush2.msra.mxu0 0.0
      %545 = vmatprep.subr.mxu0 0.0
      %546 = vmatpush2.msra.mxu0 0.0
      %547 = vmatprep.subr.mxu0 0.0
      %548 = vmatpush2.msra.mxu0 0.0
      %549 = vmatprep.subr.mxu0 0.0
      %550 = vmatpush2.msra.mxu0 0.0
      %551 = vmatprep.subr.mxu0 0.0
      %552 = vmatpush2.msra.mxu0 0.0
      %553 = vmatprep.subr.mxu0 0.0
      %554 = vmatpush2.msra.mxu0 0.0
      %555 = vmatprep.subr.mxu0 0.0
      %556 = vmatpush2.msra.mxu0 0.0
      %557 = vmatprep.subr.mxu0 0.0
      %558 = vmatpush2.msra.mxu0 0.0
      %559 = vmatprep.mubr.f32.mxu0 0.0
      %560 = vmatmul.mubr.f32.gmra.mxu0 %v470
      %v561 = vpop.f32.mrf.mxu0
      %v562 = vadd.f32 %v493, %v561
      %v563 = vpop.f32.mrf.mxu0
      %564 = vmatprep.mubr.f32.mxu0 0.0
      %565 = vmatmul.mubr.f32.gmra.mxu0 %v471
      %v566 = vpop.f32.mrf.mxu0
      %v567 = vadd.f32 %v493, %v566
      %v568 = vpop.f32.mrf.mxu0
      %569 = vdwg.mxu0
      %v570 = vadd.f32 %v370, %v562
      %v571 = vadd.f32 %v371, %v567
      %572 = vst [vmem:[#allocation12] sm:$0xff] %v570
      %573 = vst [vmem:[#allocation12 + $0x8] sm:$0xff] %v571
    $region65: #{tpu_custom_call.1} parent=1 // pred_fallthru
      _
    // Predicated region
    $region66: #{tpu_custom_call.1} parent=1 // pred_check
      _
    $region67: #{tpu_custom_call.1} parent=1 // pred_check_branch
      %575 = sbr.rel (0) target = $region69
    $region68: #{tpu_custom_call.1} parent=1 // pred_region
      %s577 = ssub.s32 256, 256
      %578 = vsyncadd [#allocation5], %s577
      %s579 = sshll.u32 [#allocation12], 4
      %s580 = int_to_ptr.vmem [resolvable:$true] %s579
      %585 = dma.vmem_to_hbm [thread:$0]  %s580, 256, %s9, [#allocation5], 128, 128, 8
    $region69: #{tpu_custom_call.1} parent=1 // pred_fallthru
      _
    // Predicated region
    $region70: #{tpu_custom_call.1} parent=1 // pred_check
      _
    $region71: #{tpu_custom_call.1} parent=1 // pred_check_branch
      %587 = sbr.rel (0) target = $region73
    $region72: #{tpu_custom_call.1} parent=1 // pred_region
      %588 = dma.done [#allocation5], 256
    $region73: #{tpu_custom_call.1} parent=1 // pred_fallthru
      _
    %589 = vsyncpa [#allocation4], 1
    %590 = vsyncpa [#allocation7], 1
    %591 = vsyncpa [#allocation10], 1
    %592 = vsyncpa [#allocation5], 1

// kernel: tpu_custom_call.1
$region0: #{tpu_custom_call.1}
  #allocation0 [shape = 'u32[]', space=smem, size = 0x4, offset = 0x4, fixed_abs, tag = 'smem constant byte address 0x4 - core index']
  #allocation1 [shape = 'u32[144,128]{1,0:T(1,128)}', space=vmem, size = 0x12000, scoped, tag = 'internal scratch']
  #allocation2 [shape = 'f32[16,128]{1,0:T(8,128)}', space=vmem, size = 0x2000, scoped, tag = 'scratch operand']
  %s0 = inlined_call_operand.hbm [shape: f32[16,128], index: 0, kind: input, shape index: {}]
  %s1 = inlined_call_operand.hbm [shape: f32[128,128], index: 1, kind: input, shape index: {}]
  %s2 = inlined_call_operand.vmem [shape: f32[1,128], index: 2, kind: input, shape index: {}]
  %s3 = inlined_call_operand.hbm [shape: f32[128,128], index: 3, kind: input, shape index: {}]
  %s4 = inlined_call_operand.vmem [shape: f32[1,128], index: 4, kind: input, shape index: {}]
  %s5 = inlined_call_operand.hbm [shape: f32[128,128], index: 5, kind: input, shape index: {}]
  %s6 = inlined_call_operand.vmem [shape: f32[1,128], index: 6, kind: input, shape index: {}]
  %s7 = inlined_call_operand.hbm [shape: f32[128,128], index: 7, kind: input, shape index: {}]
  %s8 = inlined_call_operand.vmem [shape: f32[1,128], index: 8, kind: input, shape index: {}]
  %s9 = inlined_call_operand.hbm [shape: f32[16,128], index: 9, kind: output, shape index: {}]
  %s10 = sld [smem:[#allocation0]]
  $region74: #{tpu_custom_call.1} parent=0
    _
  %s12 = ssub.s32 1, %s10
  %s13 = scalar_select 0, %s12, %s10
  $region1: #{tpu_custom_call.1} parent=0
    #allocation3 [shape = 'u8[8192]{0}', space=vmem, size = 0x2000, scoped, tag = 'input window, operand 0, single buffered']
    #allocation4 [shape = 's32[1]{0}', space=sflag, size = 0x4, scoped, tag = 'scoped memory for tpu_custom_call.1']
    #allocation5 [shape = 's32[1]{0}', space=sflag, size = 0x4, scoped, tag = 'scoped memory for tpu_custom_call.1']
    #allocation6 [shape = 'u8[65536]{0}', space=vmem, size = 0x10000, scoped, tag = 'input window, operand 1, single buffered']
    #allocation7 [shape = 's32[1]{0}', space=sflag, size = 0x4, scoped, tag = 'scoped memory for tpu_custom_call.1']
    #allocation8 [shape = 'u8[65536]{0}', space=vmem, size = 0x10000, scoped, tag = 'input window, operand 3, single buffered']
    #allocation9 [shape = 'u8[65536]{0}', space=vmem, size = 0x10000, scoped, tag = 'input window, operand 5, single buffered']
    #allocation10 [shape = 's32[1]{0}', space=sflag, size = 0x4, scoped, tag = 'scoped memory for tpu_custom_call.1']
    #allocation11 [shape = 'u8[65536]{0}', space=vmem, size = 0x10000, scoped, tag = 'input window, operand 7, single buffered']
    #allocation12 [shape = 'u8[8192]{0}', space=vmem, size = 0x2000, scoped, tag = 'output window, operand 0, single buffered']
    %14 = vsyncpa [#allocation4], 0
    %15 = vsyncpa [#allocation7], 0
    %16 = vsyncpa [#allocation10], 0
    %17 = vsyncpa [#allocation5], 0
    // Predicated region
    $region2: #{tpu_custom_call.1} parent=1 // pred_check
      _
    $region3: #{tpu_custom_call.1} parent=1 // pred_check_branch
      %19 = sbr.rel (0) target = $region5
    $region4: #{tpu_custom_call.1} parent=1 // pred_region
      %s21 = ssub.s32 256, 256
      %22 = vsyncadd [#allocation4], %s21
      %s23 = sshll.u32 [#allocation3], 4
      %s24 = int_to_ptr.vmem [resolvable:$true] %s23
      %29 = dma.hbm_to_vmem [thread:$0]  %s0, 256, %s24, [#allocation4], 128, 128, 8
    $region5: #{tpu_custom_call.1} parent=1 // pred_fallthru
      _
    // Predicated region
    $region6: #{tpu_custom_call.1} parent=1 // pred_check
      _
    $region7: #{tpu_custom_call.1} parent=1 // pred_check_branch
      %31 = sbr.rel (0) target = $region9
    $region8: #{tpu_custom_call.1} parent=1 // pred_region
      %s33 = ssub.s32 2048, 2048
      %34 = vsyncadd [#allocation7], %s33
      %s35 = sshll.u32 [#allocation6], 4
      %s36 = int_to_ptr.vmem [resolvable:$true] %s35
      %41 = dma.hbm_to_vmem [thread:$0]  %s1, 2048, %s36, [#allocation7], 128, 128, 8
    $region9: #{tpu_custom_call.1} parent=1 // pred_fallthru
      _
    // Predicated region
    $region10: #{tpu_custom_call.1} parent=1 // pred_check
      _
    $region11: #{tpu_custom_call.1} parent=1 // pred_check_branch
      %43 = sbr.rel (0) target = $region13
    $region12: #{tpu_custom_call.1} parent=1 // pred_region
      _
    $region13: #{tpu_custom_call.1} parent=1 // pred_fallthru
      _
    // Predicated region
    $region14: #{tpu_custom_call.1} parent=1 // pred_check
      _
    $region15: #{tpu_custom_call.1} parent=1 // pred_check_branch
      %45 = sbr.rel (0) target = $region17
    $region16: #{tpu_custom_call.1} parent=1 // pred_region
      %s47 = ssub.s32 2048, 2048
      %48 = vsyncadd [#allocation7], %s47
      %s49 = sshll.u32 [#allocation8], 4
      %s50 = int_to_ptr.vmem [resolvable:$true] %s49
      %55 = dma.hbm_to_vmem [thread:$0]  %s3, 2048, %s50, [#allocation7], 128, 128, 8
    $region17: #{tpu_custom_call.1} parent=1 // pred_fallthru
      _
    // Predicated region
    $region18: #{tpu_custom_call.1} parent=1 // pred_check
      _
    $region19: #{tpu_custom_call.1} parent=1 // pred_check_branch
      %57 = sbr.rel (0) target = $region21
    $region20: #{tpu_custom_call.1} parent=1 // pred_region
      _
    $region21: #{tpu_custom_call.1} parent=1 // pred_fallthru
      _
    // Predicated region
    $region22: #{tpu_custom_call.1} parent=1 // pred_check
      _
    $region23: #{tpu_custom_call.1} parent=1 // pred_check_branch
      %59 = sbr.rel (0) target = $region25
    $region24: #{tpu_custom_call.1} parent=1 // pred_region
      %s61 = ssub.s32 2048, 2048
      %62 = vsyncadd [#allocation10], %s61
      %s63 = sshll.u32 [#allocation9], 4
      %s64 = int_to_ptr.vmem [resolvable:$true] %s63
      %69 = dma.hbm_to_vmem [thread:$0]  %s5, 2048, %s64, [#allocation10], 128, 128, 8
    $region25: #{tpu_custom_call.1} parent=1 // pred_fallthru
      _
    // Predicated region
    $region26: #{tpu_custom_call.1} parent=1 // pred_check
      _
    $region27: #{tpu_custom_call.1} parent=1 // pred_check_branch
      %71 = sbr.rel (0) target = $region29
    $region28: #{tpu_custom_call.1} parent=1 // pred_region
      _
    $region29: #{tpu_custom_call.1} parent=1 // pred_fallthru
      _
    // Predicated region
    $region30: #{tpu_custom_call.1} parent=1 // pred_check
      _
    $region31: #{tpu_custom_call.1} parent=1 // pred_check_branch
      %73 = sbr.rel (0) target = $region33
    $region32: #{tpu_custom_call.1} parent=1 // pred_region
      %s75 = ssub.s32 2048, 2048
      %76 = vsyncadd [#allocation10], %s75
      %s77 = sshll.u32 [#allocation11], 4
      %s78 = int_to_ptr.vmem [resolvable:$true] %s77
      %83 = dma.hbm_to_vmem [thread:$0]  %s7, 2048, %s78, [#allocation10], 128, 128, 8
    $region33: #{tpu_custom_call.1} parent=1 // pred_fallthru
      _
    // Predicated region
    $region34: #{tpu_custom_call.1} parent=1 // pred_check
      _
    $region35: #{tpu_custom_call.1} parent=1 // pred_check_branch
      %85 = sbr.rel (0) target = $region37
    $region36: #{tpu_custom_call.1} parent=1 // pred_region
      _
    $region37: #{tpu_custom_call.1} parent=1 // pred_fallthru
      _
    // Predicated region
    $region38: #{tpu_custom_call.1} parent=1 // pred_check
      _
    $region39: #{tpu_custom_call.1} parent=1 // pred_check_branch
      %87 = sbr.rel (0) target = $region41
    $region40: #{tpu_custom_call.1} parent=1 // pred_region
      %88 = dma.done [#allocation4], 256
    $region41: #{tpu_custom_call.1} parent=1 // pred_fallthru
      _
    // Predicated region
    $region42: #{tpu_custom_call.1} parent=1 // pred_check
      _
    $region43: #{tpu_custom_call.1} parent=1 // pred_check_branch
      %90 = sbr.rel (0) target = $region45
    $region44: #{tpu_custom_call.1} parent=1 // pred_region
      %91 = dma.done [#allocation7], 2048
    $region45: #{tpu_custom_call.1} parent=1 // pred_fallthru
      _
    // Predicated region
    $region46: #{tpu_custom_call.1} parent=1 // pred_check
      _
    $region47: #{tpu_custom_call.1} parent=1 // pred_check_branch
      %93 = sbr.rel (0) target = $region49
    $region48: #{tpu_custom_call.1} parent=1 // pred_region
      %94 = dma.done [#allocation7], 2048
    $region49: #{tpu_custom_call.1} parent=1 // pred_fallthru
      _
    // Predicated region
    $region50: #{tpu_custom_call.1} parent=1 // pred_check
      _
    $region51: #{tpu_custom_call.1} parent=1 // pred_check_branch
      %96 = sbr.rel (0) target = $region53
    $region52: #{tpu_custom_call.1} parent=1 // pred_region
      %97 = dma.done [#allocation10], 2048
    $region53: #{tpu_custom_call.1} parent=1 // pred_fallthru
      _
    // Predicated region
    $region54: #{tpu_custom_call.1} parent=1 // pred_check
      _
    $region55: #{tpu_custom_call.1} parent=1 // pred_check_branch
      %99 = sbr.rel (0) target = $region57
    $region56: #{tpu_custom_call.1} parent=1 // pred_region
      %100 = dma.done [#allocation10], 2048
    $region57: #{tpu_custom_call.1} parent=1 // pred_fallthru
      _
    %p101 = scmp.eq.s32.totalorder 0, 0
    // Predicated region
    $region58: #{tpu_custom_call.1} parent=1 // pred_check
      %p102 = pneg %p101
    $region59: #{tpu_custom_call.1} parent=1 // pred_check_branch
      %104 = sbr.rel (%p102) target = $region61
    $region60: #{tpu_custom_call.1} parent=1 // pred_region
      %105 = vst [vmem:[#allocation2] sm:$0xff] 0.0
      %106 = vst [vmem:[#allocation2 + $0x8] sm:$0xff] 0.0
    $region61: #{tpu_custom_call.1} parent=1 // pred_fallthru
      _
    %v107 = vld [vmem:[#allocation3] sm:$0xff]
    %v108 = vld [vmem:[#allocation3 + $0x8] sm:$0xff]
    %v109 = vld [vmem:[#allocation6] sm:$0xff]
    %v110 = vld [vmem:[#allocation6 + $0x8] sm:$0xff]
    %v111 = vld [vmem:[#allocation6 + $0x10] sm:$0xff]
    %v112 = vld [vmem:[#allocation6 + $0x18] sm:$0xff]
    %v113 = vld [vmem:[#allocation6 + $0x20] sm:$0xff]
    %v114 = vld [vmem:[#allocation6 + $0x28] sm:$0xff]
    %v115 = vld [vmem:[#allocation6 + $0x30] sm:$0xff]
    %v116 = vld [vmem:[#allocation6 + $0x38] sm:$0xff]
    %v117 = vld [vmem:[#allocation6 + $0x40] sm:$0xff]
    %v118 = vld [vmem:[#allocation6 + $0x48] sm:$0xff]
    %v119 = vld [vmem:[#allocation6 + $0x50] sm:$0xff]
    %v120 = vld [vmem:[#allocation6 + $0x58] sm:$0xff]
    %v121 = vld [vmem:[#allocation6 + $0x60] sm:$0xff]
    %v122 = vld [vmem:[#allocation6 + $0x68] sm:$0xff]
    %v123 = vld [vmem:[#allocation6 + $0x70] sm:$0xff]
    %v124 = vld [vmem:[#allocation6 + $0x78] sm:$0xff]
    %v125 = vld [vmem:[%s2] sm:$0x1]
    %v127 = vlaneseq
    %v128 = vshrl.u32 %v127, 7
    %v129 = vsub.s32 0, %v128
    %v130 = vrot.slane %v125, %v129
    %132 = vmatprep.subr.mxu0 0.0
    %133 = vmatpush1.msra.mxu0 %v124
    %134 = vmatprep.subr.mxu0 0.0
    %135 = vmatpush1.msra.mxu0 %v123
    %136 = vmatprep.subr.mxu0 0.0
    %137 = vmatpush1.msra.mxu0 %v122
    %138 = vmatprep.subr.mxu0 0.0
    %139 = vmatpush1.msra.mxu0 %v121
    %140 = vmatprep.subr.mxu0 0.0
    %141 = vmatpush1.msra.mxu0 %v120
    %142 = vmatprep.subr.mxu0 0.0
    %143 = vmatpush1.msra.mxu0 %v119
    %144 = vmatprep.subr.mxu0 0.0
    %145 = vmatpush1.msra.mxu0 %v118
    %146 = vmatprep.subr.mxu0 0.0
    %147 = vmatpush1.msra.mxu0 %v117
    %148 = vmatprep.subr.mxu0 0.0
    %149 = vmatpush1.msra.mxu0 %v116
    %150 = vmatprep.subr.mxu0 0.0
    %151 = vmatpush1.msra.mxu0 %v115
    %152 = vmatprep.subr.mxu0 0.0
    %153 = vmatpush1.msra.mxu0 %v114
    %154 = vmatprep.subr.mxu0 0.0
    %155 = vmatpush1.msra.mxu0 %v113
    %156 = vmatprep.subr.mxu0 0.0
    %157 = vmatpush1.msra.mxu0 %v112
    %158 = vmatprep.subr.mxu0 0.0
    %159 = vmatpush1.msra.mxu0 %v111
    %160 = vmatprep.subr.mxu0 0.0
    %161 = vmatpush1.msra.mxu0 %v110
    %162 = vmatprep.subr.mxu0 0.0
    %163 = vmatpush1.msra.mxu0 %v109
    %164 = vmatprep.subr.mxu0 0.0
    %165 = vmatpush2.msra.mxu0 0.0
    %166 = vmatprep.subr.mxu0 0.0
    %167 = vmatpush2.msra.mxu0 0.0
    %168 = vmatprep.subr.mxu0 0.0
    %169 = vmatpush2.msra.mxu0 0.0
    %170 = vmatprep.subr.mxu0 0.0
    %171 = vmatpush2.msra.mxu0 0.0
    %172 = vmatprep.subr.mxu0 0.0
    %173 = vmatpush2.msra.mxu0 0.0
    %174 = vmatprep.subr.mxu0 0.0
    %175 = vmatpush2.msra.mxu0 0.0
    %176 = vmatprep.subr.mxu0 0.0
    %177 = vmatpush2.msra.mxu0 0.0
    %178 = vmatprep.subr.mxu0 0.0
    %179 = vmatpush2.msra.mxu0 0.0
    %180 = vmatprep.subr.mxu0 0.0
    %181 = vmatpush2.msra.mxu0 0.0
    %182 = vmatprep.subr.mxu0 0.0
    %183 = vmatpush2.msra.mxu0 0.0
    %184 = vmatprep.subr.mxu0 0.0
    %185 = vmatpush2.msra.mxu0 0.0
    %186 = vmatprep.subr.mxu0 0.0
    %187 = vmatpush2.msra.mxu0 0.0
    %188 = vmatprep.subr.mxu0 0.0
    %189 = vmatpush2.msra.mxu0 0.0
    %190 = vmatprep.subr.mxu0 0.0
    %191 = vmatpush2.msra.mxu0 0.0
    %192 = vmatprep.subr.mxu0 0.0
    %193 = vmatpush2.msra.mxu0 0.0
    %194 = vmatprep.subr.mxu0 0.0
    %195 = vmatpush2.msra.mxu0 0.0
    %196 = vmatprep.mubr.f32.mxu0 0.0
    %197 = vmatmul.mubr.f32.gmra.mxu0 %v107
    %v198 = vpop.f32.mrf.mxu0
    %v199 = vadd.f32 %v130, %v198
    %v200 = vpop.f32.mrf.mxu0
    %201 = vmatprep.mubr.f32.mxu0 0.0
    %202 = vmatmul.mubr.f32.gmra.mxu0 %v108
    %v203 = vpop.f32.mrf.mxu0
    %v204 = vadd.f32 %v130, %v203
    %v205 = vpop.f32.mrf.mxu0
    %206 = vdwg.mxu0
    %v207 = vmul.f32 %v199, 0.5
    %v208 = vmul.f32 %v204, 0.5
    %v209 = vmul.f32 %v199, 0.70710677
    %v210 = vmul.f32 %v204, 0.70710677
    %v211 = vand.u32 2147483647, %v209
    %v212 = vand.u32 2147483647, %v210
    %v213 = vmul.f32 %v211, 0.3275911
    %v214 = vmul.f32 %v212, 0.3275911
    %v215 = vadd.f32 %v213, 1.0
    %v216 = vadd.f32 %v214, 1.0
    %v217 = vrcp.pop %v215
    %v218 = vmul.f32 1.0, %v217
    %v219 = vrcp.pop %v216
    %v220 = vmul.f32 1.0, %v219
    %v221 = vmul.f32 %v218, 1.0614054
    %v222 = vmul.f32 %v220, 1.0614054
    %v223 = vadd.f32 %v221, -1.4531521
    %v224 = vadd.f32 %v222, -1.4531521
    %v225 = vmul.f32 %v223, %v218
    %v226 = vmul.f32 %v224, %v220
    %v227 = vadd.f32 %v225, 1.4214138
    %v228 = vadd.f32 %v226, 1.4214138
    %v229 = vmul.f32 %v227, %v218
    %v230 = vmul.f32 %v228, %v220
    %v231 = vadd.f32 %v229, -0.28449672
    %v232 = vadd.f32 %v230, -0.28449672
    %v233 = vmul.f32 %v231, %v218
    %v234 = vmul.f32 %v232, %v220
    %v235 = vadd.f32 %v233, 0.2548296
    %v236 = vadd.f32 %v234, 0.2548296
    %v237 = vmul.f32 %v235, %v218
    %v238 = vmul.f32 %v236, %v220
    %v239 = vsub.f32 0.0, %v211
    %v240 = vsub.f32 0.0, %v212
    %v241 = vmul.f32 %v239, %v211
    %v242 = vmul.f32 %v240, %v212
    %v243 = vmul.f32 %v241, 1.442695
    %v244 = vpow.pop %v243
    %v245 = vmul.f32 %v242, 1.442695
    %v246 = vpow.pop %v245
    %v247 = vmul.f32 %v237, %v244
    %v248 = vmul.f32 %v238, %v246
    %v249 = vsub.f32 1.0, %v247
    %v250 = vsub.f32 1.0, %v248
    %vm251 = vcmp.ge.f32.partialorder %v209, 0.0
    %vm252 = vcmp.ge.f32.partialorder %v210, 0.0
    %v253 = vsub.f32 0.0, %v249
    %v254 = vsub.f32 0.0, %v250
    %v255 = vsel %vm251, %v249, %v253
    %v256 = vsel %vm252, %v250, %v254
    %v257 = vadd.f32 %v255, 1.0
    %v258 = vadd.f32 %v256, 1.0
    %v259 = vmul.f32 %v207, %v257
    %v260 = vmul.f32 %v208, %v258
    %v261 = vld [vmem:[#allocation2] sm:$0xff]
    %v262 = vld [vmem:[#allocation2 + $0x8] sm:$0xff]
    %v263 = vld [vmem:[#allocation8] sm:$0xff]
    %v264 = vld [vmem:[#allocation8 + $0x8] sm:$0xff]
    %v265 = vld [vmem:[#allocation8 + $0x10] sm:$0xff]
    %v266 = vld [vmem:[#allocation8 + $0x18] sm:$0xff]
    %v267 = vld [vmem:[#allocation8 + $0x20] sm:$0xff]
    %v268 = vld [vmem:[#allocation8 + $0x28] sm:$0xff]
    %v269 = vld [vmem:[#allocation8 + $0x30] sm:$0xff]
    %v270 = vld [vmem:[#allocation8 + $0x38] sm:$0xff]
    %v271 = vld [vmem:[#allocation8 + $0x40] sm:$0xff]
    %v272 = vld [vmem:[#allocation8 + $0x48] sm:$0xff]
    %v273 = vld [vmem:[#allocation8 + $0x50] sm:$0xff]
    %v274 = vld [vmem:[#allocation8 + $0x58] sm:$0xff]
    %v275 = vld [vmem:[#allocation8 + $0x60] sm:$0xff]
    %v276 = vld [vmem:[#allocation8 + $0x68] sm:$0xff]
    %v277 = vld [vmem:[#allocation8 + $0x70] sm:$0xff]
    %v278 = vld [vmem:[#allocation8 + $0x78] sm:$0xff]
    %279 = vmatprep.subr.mxu0 0.0
    %280 = vmatpush1.msra.mxu0 %v278
    %281 = vmatprep.subr.mxu0 0.0
    %282 = vmatpush1.msra.mxu0 %v277
    %283 = vmatprep.subr.mxu0 0.0
    %284 = vmatpush1.msra.mxu0 %v276
    %285 = vmatprep.subr.mxu0 0.0
    %286 = vmatpush1.msra.mxu0 %v275
    %287 = vmatprep.subr.mxu0 0.0
    %288 = vmatpush1.msra.mxu0 %v274
    %289 = vmatprep.subr.mxu0 0.0
    %290 = vmatpush1.msra.mxu0 %v273
    %291 = vmatprep.subr.mxu0 0.0
    %292 = vmatpush1.msra.mxu0 %v272
    %293 = vmatprep.subr.mxu0 0.0
    %294 = vmatpush1.msra.mxu0 %v271
    %295 = vmatprep.subr.mxu0 0.0
    %296 = vmatpush1.msra.mxu0 %v270
    %297 = vmatprep.subr.mxu0 0.0
    %298 = vmatpush1.msra.mxu0 %v269
    %299 = vmatprep.subr.mxu0 0.0
    %300 = vmatpush1.msra.mxu0 %v268
    %301 = vmatprep.subr.mxu0 0.0
    %302 = vmatpush1.msra.mxu0 %v267
    %303 = vmatprep.subr.mxu0 0.0
    %304 = vmatpush1.msra.mxu0 %v266
    %305 = vmatprep.subr.mxu0 0.0
    %306 = vmatpush1.msra.mxu0 %v265
    %307 = vmatprep.subr.mxu0 0.0
    %308 = vmatpush1.msra.mxu0 %v264
    %309 = vmatprep.subr.mxu0 0.0
    %310 = vmatpush1.msra.mxu0 %v263
    %311 = vmatprep.subr.mxu0 0.0
    %312 = vmatpush2.msra.mxu0 0.0
    %313 = vmatprep.subr.mxu0 0.0
    %314 = vmatpush2.msra.mxu0 0.0
    %315 = vmatprep.subr.mxu0 0.0
    %316 = vmatpush2.msra.mxu0 0.0
    %317 = vmatprep.subr.mxu0 0.0
    %318 = vmatpush2.msra.mxu0 0.0
    %319 = vmatprep.subr.mxu0 0.0
    %320 = vmatpush2.msra.mxu0 0.0
    %321 = vmatprep.subr.mxu0 0.0
    %322 = vmatpush2.msra.mxu0 0.0
    %323 = vmatprep.subr.mxu0 0.0
    %324 = vmatpush2.msra.mxu0 0.0
    %325 = vmatprep.subr.mxu0 0.0
    %326 = vmatpush2.msra.mxu0 0.0
    %327 = vmatprep.subr.mxu0 0.0
    %328 = vmatpush2.msra.mxu0 0.0
    %329 = vmatprep.subr.mxu0 0.0
    %330 = vmatpush2.msra.mxu0 0.0
    %331 = vmatprep.subr.mxu0 0.0
    %332 = vmatpush2.msra.mxu0 0.0
    %333 = vmatprep.subr.mxu0 0.0
    %334 = vmatpush2.msra.mxu0 0.0
    %335 = vmatprep.subr.mxu0 0.0
    %336 = vmatpush2.msra.mxu0 0.0
    %337 = vmatprep.subr.mxu0 0.0
    %338 = vmatpush2.msra.mxu0 0.0
    %339 = vmatprep.subr.mxu0 0.0
    %340 = vmatpush2.msra.mxu0 0.0
    %341 = vmatprep.subr.mxu0 0.0
    %342 = vmatpush2.msra.mxu0 0.0
    %343 = vmatprep.mubr.f32.mxu0 0.0
    %344 = vmatmul.mubr.f32.gmra.mxu0 %v259
    %v345 = vpop.f32.mrf.mxu0
    %v346 = vadd.f32 0.0, %v345
    %v347 = vpop.f32.mrf.mxu0
    %348 = vmatprep.mubr.f32.mxu0 0.0
    %349 = vmatmul.mubr.f32.gmra.mxu0 %v260
    %v350 = vpop.f32.mrf.mxu0
    %v351 = vadd.f32 0.0, %v350
    %v352 = vpop.f32.mrf.mxu0
    %353 = vdwg.mxu0
    %v354 = vadd.f32 %v261, %v346
    %v355 = vadd.f32 %v262, %v351
    %356 = vst [vmem:[#allocation2] sm:$0xff] %v354
    %357 = vst [vmem:[#allocation2 + $0x8] sm:$0xff] %v355
    // Predicated region
    $region62: #{tpu_custom_call.1} parent=1 // pred_check
      %p358 = pneg %p101
    $region63: #{tpu_custom_call.1} parent=1 // pred_check_branch
      %360 = sbr.rel (%p358) target = $region65
    $region64: #{tpu_custom_call.1} parent=1 // pred_region
      %v361 = vld [vmem:[#allocation2] sm:$0xff]
      %v362 = vld [vmem:[#allocation2 + $0x8] sm:$0xff]
      %v363 = vld [vmem:[%s4] sm:$0x1]
      %v365 = vlaneseq
      %v366 = vshrl.u32 %v365, 7
      %v367 = vsub.s32 0, %v366
      %v368 = vrot.slane %v363, %v367
      %v370 = vadd.f32 %v361, %v368
      %v371 = vadd.f32 %v362, %v368
      %v372 = vld [vmem:[#allocation9] sm:$0xff]
      %v373 = vld [vmem:[#allocation9 + $0x8] sm:$0xff]
      %v374 = vld [vmem:[#allocation9 + $0x10] sm:$0xff]
      %v375 = vld [vmem:[#allocation9 + $0x18] sm:$0xff]
      %v376 = vld [vmem:[#allocation9 + $0x20] sm:$0xff]
      %v377 = vld [vmem:[#allocation9 + $0x28] sm:$0xff]
      %v378 = vld [vmem:[#allocation9 + $0x30] sm:$0xff]
      %v379 = vld [vmem:[#allocation9 + $0x38] sm:$0xff]
      %v380 = vld [vmem:[#allocation9 + $0x40] sm:$0xff]
      %v381 = vld [vmem:[#allocation9 + $0x48] sm:$0xff]
      %v382 = vld [vmem:[#allocation9 + $0x50] sm:$0xff]
      %v383 = vld [vmem:[#allocation9 + $0x58] sm:$0xff]
      %v384 = vld [vmem:[#allocation9 + $0x60] sm:$0xff]
      %v385 = vld [vmem:[#allocation9 + $0x68] sm:$0xff]
      %v386 = vld [vmem:[#allocation9 + $0x70] sm:$0xff]
      %v387 = vld [vmem:[#allocation9 + $0x78] sm:$0xff]
      %v388 = vld [vmem:[%s6] sm:$0x1]
      %v390 = vlaneseq
      %v391 = vshrl.u32 %v390, 7
      %v392 = vsub.s32 0, %v391
      %v393 = vrot.slane %v388, %v392
      %395 = vmatprep.subr.mxu0 0.0
      %396 = vmatpush1.msra.mxu0 %v387
      %397 = vmatprep.subr.mxu0 0.0
      %398 = vmatpush1.msra.mxu0 %v386
      %399 = vmatprep.subr.mxu0 0.0
      %400 = vmatpush1.msra.mxu0 %v385
      %401 = vmatprep.subr.mxu0 0.0
      %402 = vmatpush1.msra.mxu0 %v384
      %403 = vmatprep.subr.mxu0 0.0
      %404 = vmatpush1.msra.mxu0 %v383
      %405 = vmatprep.subr.mxu0 0.0
      %406 = vmatpush1.msra.mxu0 %v382
      %407 = vmatprep.subr.mxu0 0.0
      %408 = vmatpush1.msra.mxu0 %v381
      %409 = vmatprep.subr.mxu0 0.0
      %410 = vmatpush1.msra.mxu0 %v380
      %411 = vmatprep.subr.mxu0 0.0
      %412 = vmatpush1.msra.mxu0 %v379
      %413 = vmatprep.subr.mxu0 0.0
      %414 = vmatpush1.msra.mxu0 %v378
      %415 = vmatprep.subr.mxu0 0.0
      %416 = vmatpush1.msra.mxu0 %v377
      %417 = vmatprep.subr.mxu0 0.0
      %418 = vmatpush1.msra.mxu0 %v376
      %419 = vmatprep.subr.mxu0 0.0
      %420 = vmatpush1.msra.mxu0 %v375
      %421 = vmatprep.subr.mxu0 0.0
      %422 = vmatpush1.msra.mxu0 %v374
      %423 = vmatprep.subr.mxu0 0.0
      %424 = vmatpush1.msra.mxu0 %v373
      %425 = vmatprep.subr.mxu0 0.0
      %426 = vmatpush1.msra.mxu0 %v372
      %427 = vmatprep.subr.mxu0 0.0
      %428 = vmatpush2.msra.mxu0 0.0
      %429 = vmatprep.subr.mxu0 0.0
      %430 = vmatpush2.msra.mxu0 0.0
      %431 = vmatprep.subr.mxu0 0.0
      %432 = vmatpush2.msra.mxu0 0.0
      %433 = vmatprep.subr.mxu0 0.0
      %434 = vmatpush2.msra.mxu0 0.0
      %435 = vmatprep.subr.mxu0 0.0
      %436 = vmatpush2.msra.mxu0 0.0
      %437 = vmatprep.subr.mxu0 0.0
      %438 = vmatpush2.msra.mxu0 0.0
      %439 = vmatprep.subr.mxu0 0.0
      %440 = vmatpush2.msra.mxu0 0.0
      %441 = vmatprep.subr.mxu0 0.0
      %442 = vmatpush2.msra.mxu0 0.0
      %443 = vmatprep.subr.mxu0 0.0
      %444 = vmatpush2.msra.mxu0 0.0
      %445 = vmatprep.subr.mxu0 0.0
      %446 = vmatpush2.msra.mxu0 0.0
      %447 = vmatprep.subr.mxu0 0.0
      %448 = vmatpush2.msra.mxu0 0.0
      %449 = vmatprep.subr.mxu0 0.0
      %450 = vmatpush2.msra.mxu0 0.0
      %451 = vmatprep.subr.mxu0 0.0
      %452 = vmatpush2.msra.mxu0 0.0
      %453 = vmatprep.subr.mxu0 0.0
      %454 = vmatpush2.msra.mxu0 0.0
      %455 = vmatprep.subr.mxu0 0.0
      %456 = vmatpush2.msra.mxu0 0.0
      %457 = vmatprep.subr.mxu0 0.0
      %458 = vmatpush2.msra.mxu0 0.0
      %459 = vmatprep.mubr.f32.mxu0 0.0
      %460 = vmatmul.mubr.f32.gmra.mxu0 %v370
      %v461 = vpop.f32.mrf.mxu0
      %v462 = vadd.f32 %v393, %v461
      %v463 = vpop.f32.mrf.mxu0
      %464 = vmatprep.mubr.f32.mxu0 0.0
      %465 = vmatmul.mubr.f32.gmra.mxu0 %v371
      %v466 = vpop.f32.mrf.mxu0
      %v467 = vadd.f32 %v393, %v466
      %v468 = vpop.f32.mrf.mxu0
      %469 = vdwg.mxu0
      %v470 = vmax.f32 %v462, 0.0
      %v471 = vmax.f32 %v467, 0.0
      %v472 = vld [vmem:[#allocation11] sm:$0xff]
      %v473 = vld [vmem:[#allocation11 + $0x8] sm:$0xff]
      %v474 = vld [vmem:[#allocation11 + $0x10] sm:$0xff]
      %v475 = vld [vmem:[#allocation11 + $0x18] sm:$0xff]
      %v476 = vld [vmem:[#allocation11 + $0x20] sm:$0xff]
      %v477 = vld [vmem:[#allocation11 + $0x28] sm:$0xff]
      %v478 = vld [vmem:[#allocation11 + $0x30] sm:$0xff]
      %v479 = vld [vmem:[#allocation11 + $0x38] sm:$0xff]
      %v480 = vld [vmem:[#allocation11 + $0x40] sm:$0xff]
      %v481 = vld [vmem:[#allocation11 + $0x48] sm:$0xff]
      %v482 = vld [vmem:[#allocation11 + $0x50] sm:$0xff]
      %v483 = vld [vmem:[#allocation11 + $0x58] sm:$0xff]
      %v484 = vld [vmem:[#allocation11 + $0x60] sm:$0xff]
      %v485 = vld [vmem:[#allocation11 + $0x68] sm:$0xff]
      %v486 = vld [vmem:[#allocation11 + $0x70] sm:$0xff]
      %v487 = vld [vmem:[#allocation11 + $0x78] sm:$0xff]
      %v488 = vld [vmem:[%s8] sm:$0x1]
      %v490 = vlaneseq
      %v491 = vshrl.u32 %v490, 7
      %v492 = vsub.s32 0, %v491
      %v493 = vrot.slane %v488, %v492
      %495 = vmatprep.subr.mxu0 0.0
      %496 = vmatpush1.msra.mxu0 %v487
      %497 = vmatprep.subr.mxu0 0.0
      %498 = vmatpush1.msra.mxu0 %v486
      %499 = vmatprep.subr.mxu0 0.0
      %500 = vmatpush1.msra.mxu0 %v485
      %501 = vmatprep.subr.mxu0 0.0
      %502 = vmatpush1.msra.mxu0 %v484
      %503 = vmatprep.subr.mxu0 0.0
      %504 = vmatpush1.msra.mxu0 %v483
      %505 = vmatprep.subr.mxu0 0.0
      %506 = vmatpush1.msra.mxu0 %v482
      %507 = vmatprep.subr.mxu0 0.0
      %508 = vmatpush1.msra.mxu0 %v481
      %509 = vmatprep.subr.mxu0 0.0
      %510 = vmatpush1.msra.mxu0 %v480
      %511 = vmatprep.subr.mxu0 0.0
      %512 = vmatpush1.msra.mxu0 %v479
      %513 = vmatprep.subr.mxu0 0.0
      %514 = vmatpush1.msra.mxu0 %v478
      %515 = vmatprep.subr.mxu0 0.0
      %516 = vmatpush1.msra.mxu0 %v477
      %517 = vmatprep.subr.mxu0 0.0
      %518 = vmatpush1.msra.mxu0 %v476
      %519 = vmatprep.subr.mxu0 0.0
      %520 = vmatpush1.msra.mxu0 %v475
      %521 = vmatprep.subr.mxu0 0.0
      %522 = vmatpush1.msra.mxu0 %v474
      %523 = vmatprep.subr.mxu0 0.0
      %524 = vmatpush1.msra.mxu0 %v473
      %525 = vmatprep.subr.mxu0 0.0
      %526 = vmatpush1.msra.mxu0 %v472
      %527 = vmatprep.subr.mxu0 0.0
      %528 = vmatpush2.msra.mxu0 0.0
      %529 = vmatprep.subr.mxu0 0.0
      %530 = vmatpush2.msra.mxu0 0.0
      %531 = vmatprep.subr.mxu0 0.0
      %532 = vmatpush2.msra.mxu0 0.0
      %533 = vmatprep.subr.mxu0 0.0
      %534 = vmatpush2.msra.mxu0 0.0
      %535 = vmatprep.subr.mxu0 0.0
      %536 = vmatpush2.msra.mxu0 0.0
      %537 = vmatprep.subr.mxu0 0.0
      %538 = vmatpush2.msra.mxu0 0.0
      %539 = vmatprep.subr.mxu0 0.0
      %540 = vmatpush2.msra.mxu0 0.0
      %541 = vmatprep.subr.mxu0 0.0
      %542 = vmatpush2.msra.mxu0 0.0
      %543 = vmatprep.subr.mxu0 0.0
      %544 = vmatpush2.msra.mxu0 0.0
      %545 = vmatprep.subr.mxu0 0.0
      %546 = vmatpush2.msra.mxu0 0.0
      %547 = vmatprep.subr.mxu0 0.0
      %548 = vmatpush2.msra.mxu0 0.0
      %549 = vmatprep.subr.mxu0 0.0
      %550 = vmatpush2.msra.mxu0 0.0
      %551 = vmatprep.subr.mxu0 0.0
      %552 = vmatpush2.msra.mxu0 0.0
      %553 = vmatprep.subr.mxu0 0.0
      %554 = vmatpush2.msra.mxu0 0.0
      %555 = vmatprep.subr.mxu0 0.0
      %556 = vmatpush2.msra.mxu0 0.0
      %557 = vmatprep.subr.mxu0 0.0
      %558 = vmatpush2.msra.mxu0 0.0
      %559 = vmatprep.mubr.f32.mxu0 0.0
      %560 = vmatmul.mubr.f32.gmra.mxu0 %v470
      %v561 = vpop.f32.mrf.mxu0
      %v562 = vadd.f32 %v493, %v561
      %v563 = vpop.f32.mrf.mxu0
      %564 = vmatprep.mubr.f32.mxu0 0.0
      %565 = vmatmul.mubr.f32.gmra.mxu0 %v471
      %v566 = vpop.f32.mrf.mxu0
      %v567 = vadd.f32 %v493, %v566
      %v568 = vpop.f32.mrf.mxu0
      %569 = vdwg.mxu0
      %v570 = vadd.f32 %v370, %v562
      %v571 = vadd.f32 %v371, %v567
      %572 = vst [vmem:[#allocation12] sm:$0xff] %v570
      %573 = vst [vmem:[#allocation12 + $0x8] sm:$0xff] %v571
    $region65: #{tpu_custom_call.1} parent=1 // pred_fallthru
      _
    // Predicated region
    $region66: #{tpu_custom_call.1} parent=1 // pred_check
      _
    $region67: #{tpu_custom_call.1} parent=1 // pred_check_branch
      %575 = sbr.rel (0) target = $region69
    $region68: #{tpu_custom_call.1} parent=1 // pred_region
      %s577 = ssub.s32 256, 256
      %578 = vsyncadd [#allocation5], %s577
      %s579 = sshll.u32 [#allocation12], 4
      %s580 = int_to_ptr.vmem [resolvable:$true] %s579
      %585 = dma.vmem_to_hbm [thread:$0]  %s580, 256, %s9, [#allocation5], 128, 128, 8
    $region69: #{tpu_custom_call.1} parent=1 // pred_fallthru
      _
    // Predicated region
    $region70: #{tpu_custom_call.1} parent=1 // pred_check
      _
    $region71: #{tpu_custom_call.1} parent=1 // pred_check_branch
      %587 = sbr.rel (0) target = $region73
    $region72: #{tpu_custom_call.1} parent=1 // pred_region
      %588 = dma.done [#allocation5], 256
    $region73: #{tpu_custom_call.1} parent=1 // pred_fallthru
      _
    %589 = vsyncpa [#allocation4], 1
    %590 = vsyncpa [#allocation7], 1
    %591 = vsyncpa [#allocation10], 1
    %592 = vsyncpa [#allocation5], 1

</llo_original>
